<compile_context>
chip_gen: v7x
topology: tpu7x:2x2x1
jax: 0.10.0
libtpu: 0.0.40
codegen_flags: <defaults>
</compile_context>

<pallas_src>
import functools

import jax
import jax.numpy as jnp
from jax import lax
from jax.experimental import pallas as pl
from jax.experimental.pallas import tpu as pltpu

_BN_EPS = 1e-5
_LEAKY_SLOPE = 0.01


# ----------------------------------------------------------------------------- kernel
def _lpt_kernel(
    fl_ref, fnb_ref, pein_ref,
    wq_ref, wkv_ref, wp1_ref, wp2_ref, ww_ref,
    aff_ref, bp1_ref,
    out_ref,
    *, k, cout, neg_slope, compute_dtype,
):
    cdt = compute_dtype
    tn = fl_ref.shape[0]
    cin = fl_ref.shape[1]

    def leaky(x):
        return jnp.where(x >= 0, x, neg_slope * x)

    # Packed per-channel rows (1, C); used with implicit broadcasting (no (TN, C) tiles
    # materialized -> no vreg pinning).
    bqk = aff_ref[0:1, :]   # bq - bk (pre-combined)
    bv  = aff_ref[1:2, :]
    bp2 = aff_ref[2:3, :]
    s1  = aff_ref[3:4, :]   # folded BN1 scale
    t1  = aff_ref[4:5, :]   # folded BN1 shift
    bw  = aff_ref[5:6, :]
    s2  = aff_ref[6:7, :]   # folded BN2 scale
    t2  = aff_ref[7:8, :]   # folded BN2 shift
    bp1 = bp1_ref[0:1, :]   # folded PE layer-1 bias

    # ---- q projection: one (TN, Cin) @ (Cin, Cout) dot, shared by all k neighbours ----
    q = jnp.dot(fl_ref[...].astype(cdt), wq_ref[...].astype(cdt),
                preferred_element_type=jnp.float32) + bqk              # (TN, Cout) f32

    # ---- neighbour math batched over k: one dot per layer on (k*TN, .) slabs ----------
    fi = fnb_ref[...].reshape(k * tn, cin).astype(cdt)                 # (k*TN, Cin)
    pin = pein_ref[...].reshape(k * tn, 4).astype(cdt)                 # (k*TN, 4)

    # positional-encoding MLP: Linear(4, hid) (BN folded) -> LeakyReLU -> Linear(hid, Cout)
    h = leaky(jnp.dot(pin, wp1_ref[...].astype(cdt),
                      preferred_element_type=jnp.float32) + bp1)       # (k*TN, hid)
    pe = jnp.dot(h.astype(cdt), wp2_ref[...].astype(cdt),
                 preferred_element_type=jnp.float32) + bp2             # (k*TN, Cout)

    # fused K|V projection: fi multiplied ONCE against [-Wk | Wv]
    kv = jnp.dot(fi, wkv_ref[...].astype(cdt),
                 preferred_element_type=jnp.float32)                   # (k*TN, 2*Cout)
    neg_k = kv[:, :cout]                                               # -(fi @ Wk)
    v = kv[:, cout:] + bv + pe                                         # (k*TN, Cout)

    # attention logits: (q - k + pe) -> BN -> LeakyReLU -> Linear -> BN -> LeakyReLU
    w = (neg_k + pe).reshape(k, tn, cout) + q[None]                    # broadcast q over k
    w = w.reshape(k * tn, cout)
    w = leaky(w * s1 + t1)
    w = jnp.dot(w.astype(cdt), ww_ref[...].astype(cdt),
                preferred_element_type=jnp.float32) + bw
    w = leaky(w * s2 + t2)

    # plain softmax over the k neighbours + weighted sum (k is small; no online trick)
    w3 = w.reshape(k, tn, cout)
    v3 = v.reshape(k, tn, cout)
    m = jnp.max(w3, axis=0)
    p = jnp.exp(w3 - m[None])
    l = jnp.sum(p, axis=0)
    acc = jnp.sum(p * v3, axis=0)

    # normalization via EUP reciprocal (frees VPU divide slots)
    out_ref[...] = (acc * pl.reciprocal(l, approx=True)).astype(out_ref.dtype)


# ----------------------------------------------------------------------------- helpers
def _knn_indices(xyz_x, xyz_y, k, batch_x, batch_y):
    """For each point in xyz_y, indices of the k nearest points in xyz_x (same batch)."""
    d = jnp.sum((xyz_y[:, None, :] - xyz_x[None, :, :]) ** 2, axis=-1)
    same = batch_y[:, None] == batch_x[None, :]
    d = jnp.where(same, d, jnp.inf)
    _, idx = lax.top_k(-d, k)
    return idx  # (Ny, k)


def _bn_affine(gamma, beta, mean, var, eps=_BN_EPS):
    s = gamma / jnp.sqrt(var + eps)
    return s, beta - mean * s


def _choose_point_tile(n):
    """Big tiles amortize the ~0.35us per-grid-step overhead (the dominant cost at small
    tiles); keep >=2 grid steps, 8-row aligned, so the 'parallel' axis still shards across
    v7x's two TensorCores. Footprint at TN=512 is well under every chip's VMEM."""
    if n <= 8:
        return 8
    half = ((((n + 1) // 2) + 7) // 8) * 8
    return int(min(512, half))


# ----------------------------------------------------------------------------- wrapper
def local_point_trans_forward(params, fea_i, fea_last, xyz_i, xyz_last, batch,
                              t_i, t_last=1.0, *, compute_dtype=jnp.bfloat16,
                              point_tile=None):
    """Forward pass of Local_Point_Trans. Returns res of shape (N, ch_out).

    compute_dtype controls the HBM-streamed activation dtype and MXU operand dtype
    (default bf16 for v6e/v7x throughput); accumulation and elementwise math are f32."""
    k = int(params["k"])
    n, cin = fea_i.shape
    cout = params["Wq"].shape[1]
    hid = params["Wp1"].shape[1]
    cdt = compute_dtype

    # ---- kNN + gather, produced directly in neighbour-major (k, N, .) order ----------
    # TODO(synk): dense O(N^2) kNN + data-dependent gather stay in plain JAX.
    idx = _knn_indices(xyz_i, xyz_last, k, batch, batch)               # (N, k)
    idx_t = idx.T                                                      # (k, N)
    fea_nb = fea_i[idx_t]                                              # (k, N, Cin)
    dxyz = xyz_i[idx_t] - xyz_last[None, :, :]                         # (k, N, 3)
    dt = jnp.full((k, n, 1), t_i - t_last, dtype=xyz_i.dtype)
    pe_in = jnp.concatenate([dxyz, dt], axis=-1)                       # (k, N, 4)

    # ---- fold BatchNorms (inference) and biases at trace time -------------------------
    s_p, t_p = _bn_affine(params["bn_p_gamma"], params["bn_p_beta"],
                          params["bn_p_mean"], params["bn_p_var"])
    wp1f = params["Wp1"] * s_p[None, :]
    bp1f = params["bp1"] * s_p + t_p
    s1, t1 = _bn_affine(params["bn_w1_gamma"], params["bn_w1_beta"],
                        params["bn_w1_mean"], params["bn_w1_var"])
    s2, t2 = _bn_affine(params["bn_w2_gamma"], params["bn_w2_beta"],
                        params["bn_w2_mean"], params["bn_w2_var"])
    bqk = params["bq"] - params["bk"]

    # Per-channel rows packed into ONE (8, Cout) operand (+1 row for bp1): fewer tiny DMAs.
    aff = jnp.stack([bqk, params["bv"], params["bp2"],
                     s1, t1, params["bw"], s2, t2]).astype(jnp.float32)   # (8, Cout)
    bp1_row = bp1f.reshape(1, hid).astype(jnp.float32)

    # Weight matrices in compute dtype; Wk and Wv fused into one RHS (Wk pre-negated).
    wq = params["Wq"].astype(cdt)
    wkv = jnp.concatenate([-params["Wk"], params["Wv"]], axis=1).astype(cdt)  # (Cin, 2*Cout)
    wp1 = wp1f.astype(cdt)
    wp2 = params["Wp2"].astype(cdt)
    ww = params["Ww"].astype(cdt)

    # ---- pad the point axis to whole tiles; stream activations in compute dtype -------
    tn = point_tile or _choose_point_tile(n)
    n_pad = int(pl.cdiv(n, tn)) * tn
    fea_last_p = fea_last.astype(cdt)
    fea_nb = fea_nb.astype(cdt)
    pe_in = pe_in.astype(cdt)
    if n_pad != n:
        pad = n_pad - n
        fea_last_p = jnp.pad(fea_last_p, ((0, pad), (0, 0)))
        fea_nb = jnp.pad(fea_nb, ((0, 0), (0, pad), (0, 0)))
        pe_in = jnp.pad(pe_in, ((0, 0), (0, pad), (0, 0)))

    weights = (wq, wkv, wp1, wp2, ww, aff, bp1_row)
    full2d = lambda a: pl.BlockSpec(a.shape, lambda i: (0, 0))
    kernel = functools.partial(_lpt_kernel, k=k, cout=cout,
                               neg_slope=_LEAKY_SLOPE, compute_dtype=cdt)

    res = pl.pallas_call(
        kernel,
        out_shape=jax.ShapeDtypeStruct((n_pad, cout), fea_i.dtype),
        grid_spec=pltpu.PrefetchScalarGridSpec(
            num_scalar_prefetch=0,
            grid=(n_pad // tn,),
            in_specs=[
                pl.BlockSpec((tn, cin), lambda i: (i, 0)),          # fea_last point tile
                pl.BlockSpec((k, tn, cin), lambda i: (0, i, 0)),    # gathered neighbour feats
                pl.BlockSpec((k, tn, 4), lambda i: (0, i, 0)),      # xyzt deltas
            ] + [full2d(a) for a in weights],
            out_specs=pl.BlockSpec((tn, cout), lambda i: (i, 0)),
        ),
        compiler_params=pltpu.CompilerParams(
            dimension_semantics=("parallel",),
            vmem_limit_bytes=32 * 1024 * 1024,   # explicit; safe on v5e/v6e/v7x
        ),
    )(fea_last_p, fea_nb, pe_in, *weights)
    return res[:n]


# ----------------------------------------------------------------------------- reference
def _reference_forward(params, fea_i, fea_last, xyz_i, xyz_last, batch, t_i, t_last=1.0):
    k = int(params["k"])
    n, cin = fea_i.shape
    idx = _knn_indices(xyz_i, xyz_last, k, batch, batch)
    fl = jnp.broadcast_to(fea_last[:, None, :], (n, k, cin))
    fi = fea_i[idx]
    xyzt_last = jnp.concatenate(
        [jnp.broadcast_to(xyz_last[:, None, :], (n, k, 3)),
         jnp.full((n, k, 1), t_last, xyz_last.dtype)], axis=-1)
    xyzt_i = jnp.concatenate(
        [xyz_i[idx], jnp.full((n, k, 1), t_i, xyz_i.dtype)], axis=-1)
    pe = xyzt_i - xyzt_last

    def bn(x, g, b, m, v):
        return (x - m) / jnp.sqrt(v + _BN_EPS) * g + b

    def leaky(x):
        return jnp.where(x >= 0, x, _LEAKY_SLOPE * x)

    h = pe @ params["Wp1"] + params["bp1"]
    h = bn(h, params["bn_p_gamma"], params["bn_p_beta"], params["bn_p_mean"], params["bn_p_var"])
    h = leaky(h)
    pe = h @ params["Wp2"] + params["bp2"]

    w = (fl @ params["Wq"] + params["bq"]) - (fi @ params["Wk"] + params["bk"]) + pe
    w = bn(w, params["bn_w1_gamma"], params["bn_w1_beta"], params["bn_w1_mean"], params["bn_w1_var"])
    w = leaky(w)
    w = w @ params["Ww"] + params["bw"]
    w = bn(w, params["bn_w2_gamma"], params["bn_w2_beta"], params["bn_w2_mean"], params["bn_w2_var"])
    w = leaky(w)
    w = jax.nn.softmax(w, axis=1)          # softmax over the k neighbours
    v = fi @ params["Wv"] + params["bv"] + pe
    return jnp.sum(w * v, axis=1)


# ----------------------------------------------------------------------------- params
def init_params(key, k, ch_in, ch_out, hidden=64):
    ks = jax.random.split(key, 16)

    def lin(kk, fan_in, fan_out):
        return jax.random.normal(kk, (fan_in, fan_out), jnp.float32) / jnp.sqrt(float(fan_in))

    def bn(kk, c):
        k1, k2, k3, k4 = jax.random.split(kk, 4)
        return (1.0 + 0.1 * jax.random.normal(k1, (c,), jnp.float32),
                0.1 * jax.random.normal(k2, (c,), jnp.float32),
                0.1 * jax.random.normal(k3, (c,), jnp.float32),
                0.5 + 0.5 * jnp.abs(jax.random.normal(k4, (c,), jnp.float32)))

    p = {"k": k}
    p["Wq"] = lin(ks[0], ch_in, ch_out); p["bq"] = 0.1 * jax.random.normal(ks[1], (ch_out,), jnp.float32)
    p["Wk"] = lin(ks[2], ch_in, ch_out); p["bk"] = 0.1 * jax.random.normal(ks[3], (ch_out,), jnp.float32)
    p["Wv"] = lin(ks[4], ch_in, ch_out); p["bv"] = 0.1 * jax.random.normal(ks[5], (ch_out,), jnp.float32)
    p["Wp1"] = lin(ks[6], 4, hidden);    p["bp1"] = 0.1 * jax.random.normal(ks[7], (hidden,), jnp.float32)
    p["Wp2"] = lin(ks[8], hidden, ch_out); p["bp2"] = 0.1 * jax.random.normal(ks[9], (ch_out,), jnp.float32)
    p["Ww"] = lin(ks[10], ch_out, ch_out); p["bw"] = 0.1 * jax.random.normal(ks[11], (ch_out,), jnp.float32)
    (p["bn_p_gamma"], p["bn_p_beta"], p["bn_p_mean"], p["bn_p_var"]) = bn(ks[12], hidden)
    (p["bn_w1_gamma"], p["bn_w1_beta"], p["bn_w1_mean"], p["bn_w1_var"]) = bn(ks[13], ch_out)
    (p["bn_w2_gamma"], p["bn_w2_beta"], p["bn_w2_mean"], p["bn_w2_var"]) = bn(ks[14], ch_out)
    return p


# ----------------------------------------------------------------------------- demo
if __name__ == "__main__":
    root = jax.random.PRNGKey(0)
    k_neighbors, ch_in, ch_out = 4, 32, 32
    n_clouds, pts_per_cloud = 2, 32
    N = n_clouds * pts_per_cloud

    keys = jax.random.split(root, 6)
    fea_i = jax.random.normal(keys[0], (N, ch_in), jnp.float32)
    fea_last = jax.random.normal(keys[1], (N, ch_in), jnp.float32)
    xyz_i = jax.random.normal(keys[2], (N, 3), jnp.float32)
    xyz_last = jax.random.normal(keys[3], (N, 3), jnp.float32)
    batch = jnp.repeat(jnp.arange(n_clouds, dtype=jnp.int32), pts_per_cloud)
    params = init_params(keys[4], k_neighbors, ch_in, ch_out)
    t_i, t_last = 2.0, 1.0

    ref = _reference_forward(params, fea_i, fea_last, xyz_i, xyz_last, batch, t_i, t_last)

    # f32 path: tight check (tolerance covers MXU f32 rounding + approx EUP reciprocal).
    res_f32 = local_point_trans_forward(params, fea_i, fea_last, xyz_i, xyz_last,
                                        batch, t_i, t_last, compute_dtype=jnp.float32)
    jax.block_until_ready(res_f32)
    assert res_f32.shape == (N, ch_out), res_f32.shape
    err_f32 = float(jnp.max(jnp.abs(res_f32 - ref)))
    assert jnp.allclose(res_f32, ref, atol=1e-2, rtol=1e-2), err_f32

    # bf16 path (default): bf16 HBM streaming + bf16 MXU operands, f32 accumulation.
    res_bf16 = local_point_trans_forward(params, fea_i, fea_last, xyz_i, xyz_last,
                                         batch, t_i, t_last)
    jax.block_until_ready(res_bf16)
    assert res_bf16.shape == (N, ch_out), res_bf16.shape
    err_bf16 = float(jnp.max(jnp.abs(res_bf16 - ref)))
    assert jnp.allclose(res_bf16, ref, atol=1e-1, rtol=1e-1), err_bf16

    print("KERNEL_OK")
</pallas_src>

<mosaic_0001>
module attributes {stable_mosaic.version = 11 : i64} {
  func.func @_lpt_kernel(%arg0: i32, %arg1: memref<32x32xf32, #tpu.memory_space<vmem>>, %arg2: memref<4x32x32xf32, #tpu.memory_space<vmem>>, %arg3: memref<4x32x4xf32, #tpu.memory_space<vmem>>, %arg4: memref<32x32xf32, #tpu.memory_space<vmem>>, %arg5: memref<32x64xf32, #tpu.memory_space<vmem>>, %arg6: memref<4x64xf32, #tpu.memory_space<vmem>>, %arg7: memref<64x32xf32, #tpu.memory_space<vmem>>, %arg8: memref<32x32xf32, #tpu.memory_space<vmem>>, %arg9: memref<8x32xf32, #tpu.memory_space<vmem>>, %arg10: memref<1x64xf32, #tpu.memory_space<vmem>>, %arg11: memref<32x32xf32, #tpu.memory_space<vmem>>) attributes {dimension_semantics = [#tpu.dimension_semantics<parallel>], iteration_bounds = array<i64: 2>, scalar_prefetch = 0 : i64, scratch_operands = 0 : i64, tpu.core_type = #tpu.core_type<tc>, window_params = [{transform_indices = @transform_0, window_bounds = array<i64: 32, 32>}, {transform_indices = @transform_1, window_bounds = array<i64: 4, 32, 32>}, {transform_indices = @transform_2, window_bounds = array<i64: 4, 32, 4>}, {pipeline_mode = #tpu.pipeline_mode<synchronous>, transform_indices = @transform_3, window_bounds = array<i64: 32, 32>}, {pipeline_mode = #tpu.pipeline_mode<synchronous>, transform_indices = @transform_4, window_bounds = array<i64: 32, 64>}, {pipeline_mode = #tpu.pipeline_mode<synchronous>, transform_indices = @transform_5, window_bounds = array<i64: 4, 64>}, {pipeline_mode = #tpu.pipeline_mode<synchronous>, transform_indices = @transform_6, window_bounds = array<i64: 64, 32>}, {pipeline_mode = #tpu.pipeline_mode<synchronous>, transform_indices = @transform_7, window_bounds = array<i64: 32, 32>}, {pipeline_mode = #tpu.pipeline_mode<synchronous>, transform_indices = @transform_8, window_bounds = array<i64: 8, 32>}, {pipeline_mode = #tpu.pipeline_mode<synchronous>, transform_indices = @transform_9, window_bounds = array<i64: 1, 64>}, {transform_indices = @transform_10, window_bounds = array<i64: 32, 32>}]} {
    %c0 = arith.constant 0 : index
    %c0_0 = arith.constant 0 : index
    %0 = vector.load %arg9[%c0, %c0_0] : memref<8x32xf32, #tpu.memory_space<vmem>>, vector<1x32xf32>
    %c1 = arith.constant 1 : index
    %c0_1 = arith.constant 0 : index
    %1 = vector.load %arg9[%c1, %c0_1] : memref<8x32xf32, #tpu.memory_space<vmem>>, vector<1x32xf32>
    %c2 = arith.constant 2 : index
    %c0_2 = arith.constant 0 : index
    %2 = vector.load %arg9[%c2, %c0_2] : memref<8x32xf32, #tpu.memory_space<vmem>>, vector<1x32xf32>
    %c3 = arith.constant 3 : index
    %c0_3 = arith.constant 0 : index
    %3 = vector.load %arg9[%c3, %c0_3] : memref<8x32xf32, #tpu.memory_space<vmem>>, vector<1x32xf32>
    %c4 = arith.constant 4 : index
    %c0_4 = arith.constant 0 : index
    %4 = vector.load %arg9[%c4, %c0_4] : memref<8x32xf32, #tpu.memory_space<vmem>>, vector<1x32xf32>
    %c5 = arith.constant 5 : index
    %c0_5 = arith.constant 0 : index
    %5 = vector.load %arg9[%c5, %c0_5] : memref<8x32xf32, #tpu.memory_space<vmem>>, vector<1x32xf32>
    %c6 = arith.constant 6 : index
    %c0_6 = arith.constant 0 : index
    %6 = vector.load %arg9[%c6, %c0_6] : memref<8x32xf32, #tpu.memory_space<vmem>>, vector<1x32xf32>
    %c7 = arith.constant 7 : index
    %c0_7 = arith.constant 0 : index
    %7 = vector.load %arg9[%c7, %c0_7] : memref<8x32xf32, #tpu.memory_space<vmem>>, vector<1x32xf32>
    %c0_8 = arith.constant 0 : index
    %c0_9 = arith.constant 0 : index
    %8 = vector.load %arg10[%c0_8, %c0_9] : memref<1x64xf32, #tpu.memory_space<vmem>>, vector<1x64xf32>
    %c0_10 = arith.constant 0 : index
    %c0_11 = arith.constant 0 : index
    %9 = vector.load %arg1[%c0_10, %c0_11] : memref<32x32xf32, #tpu.memory_space<vmem>>, vector<32x32xf32>
    %c0_12 = arith.constant 0 : index
    %c0_13 = arith.constant 0 : index
    %10 = vector.load %arg4[%c0_12, %c0_13] : memref<32x32xf32, #tpu.memory_space<vmem>>, vector<32x32xf32>
    %cst = arith.constant dense<0.000000e+00> : vector<32x32xf32>
    %11 = tpu.matmul %9, %10, %cst {dimension_numbers = #tpu.dot_dimension_numbers<[1], [0], [0], [1], [0, 0, 1, 1], [], []>} : vector<32x32xf32>, vector<32x32xf32>, vector<32x32xf32> -> vector<32x32xf32>
    %12 = vector.broadcast %0 : vector<1x32xf32> to vector<32x32xf32>
    %13 = arith.addf %11, %12 : vector<32x32xf32>
    %c0_14 = arith.constant 0 : index
    %c0_15 = arith.constant 0 : index
    %c0_16 = arith.constant 0 : index
    %14 = vector.load %arg2[%c0_14, %c0_15, %c0_16] : memref<4x32x32xf32, #tpu.memory_space<vmem>>, vector<4x32x32xf32>
    %15 = vector.shape_cast %14 : vector<4x32x32xf32> to vector<128x32xf32>
    %c0_17 = arith.constant 0 : index
    %c0_18 = arith.constant 0 : index
    %c0_19 = arith.constant 0 : index
    %16 = vector.load %arg3[%c0_17, %c0_18, %c0_19] : memref<4x32x4xf32, #tpu.memory_space<vmem>>, vector<4x32x4xf32>
    %17 = vector.shape_cast %16 : vector<4x32x4xf32> to vector<128x4xf32>
    %c0_20 = arith.constant 0 : index
    %c0_21 = arith.constant 0 : index
    %18 = vector.load %arg6[%c0_20, %c0_21] : memref<4x64xf32, #tpu.memory_space<vmem>>, vector<4x64xf32>
    %cst_22 = arith.constant dense<0.000000e+00> : vector<128x64xf32>
    %19 = tpu.matmul %17, %18, %cst_22 {dimension_numbers = #tpu.dot_dimension_numbers<[1], [0], [0], [1], [0, 0, 1, 1], [], []>} : vector<128x4xf32>, vector<4x64xf32>, vector<128x64xf32> -> vector<128x64xf32>
    %20 = vector.broadcast %8 : vector<1x64xf32> to vector<128x64xf32>
    %21 = arith.addf %19, %20 : vector<128x64xf32>
    %cst_23 = arith.constant 0.000000e+00 : f32
    %22 = vector.broadcast %cst_23 : f32 to vector<128x64xf32>
    %23 = arith.cmpf oge, %21, %22 : vector<128x64xf32>
    %cst_24 = arith.constant 0.00999999977 : f32
    %24 = vector.broadcast %cst_24 : f32 to vector<128x64xf32>
    %25 = arith.mulf %24, %21 : vector<128x64xf32>
    %26 = arith.select %23, %21, %25 : vector<128x64xi1>, vector<128x64xf32>
    %c0_25 = arith.constant 0 : index
    %c0_26 = arith.constant 0 : index
    %27 = vector.load %arg7[%c0_25, %c0_26] : memref<64x32xf32, #tpu.memory_space<vmem>>, vector<64x32xf32>
    %cst_27 = arith.constant dense<0.000000e+00> : vector<128x32xf32>
    %28 = tpu.matmul %26, %27, %cst_27 {dimension_numbers = #tpu.dot_dimension_numbers<[1], [0], [0], [1], [0, 0, 1, 1], [], []>} : vector<128x64xf32>, vector<64x32xf32>, vector<128x32xf32> -> vector<128x32xf32>
    %29 = vector.broadcast %2 : vector<1x32xf32> to vector<128x32xf32>
    %30 = arith.addf %28, %29 : vector<128x32xf32>
    %c0_28 = arith.constant 0 : index
    %c0_29 = arith.constant 0 : index
    %31 = vector.load %arg5[%c0_28, %c0_29] : memref<32x64xf32, #tpu.memory_space<vmem>>, vector<32x64xf32>
    %cst_30 = arith.constant dense<0.000000e+00> : vector<128x64xf32>
    %32 = tpu.matmul %15, %31, %cst_30 {dimension_numbers = #tpu.dot_dimension_numbers<[1], [0], [0], [1], [0, 0, 1, 1], [], []>} : vector<128x32xf32>, vector<32x64xf32>, vector<128x64xf32> -> vector<128x64xf32>
    %33 = vector.extract_strided_slice %32 {offsets = [0, 0], sizes = [128, 32], strides = [1, 1]} : vector<128x64xf32> to vector<128x32xf32>
    %34 = vector.extract_strided_slice %32 {offsets = [0, 32], sizes = [128, 32], strides = [1, 1]} : vector<128x64xf32> to vector<128x32xf32>
    %35 = vector.broadcast %1 : vector<1x32xf32> to vector<128x32xf32>
    %36 = arith.addf %34, %35 : vector<128x32xf32>
    %37 = arith.addf %36, %30 : vector<128x32xf32>
    %38 = arith.addf %33, %30 : vector<128x32xf32>
    %39 = vector.shape_cast %38 : vector<128x32xf32> to vector<4x32x32xf32>
    %40 = vector.shape_cast %13 : vector<32x32xf32> to vector<1x32x32xf32>
    %41 = vector.broadcast %40 : vector<1x32x32xf32> to vector<4x32x32xf32>
    %42 = arith.addf %39, %41 : vector<4x32x32xf32>
    %43 = vector.shape_cast %42 : vector<4x32x32xf32> to vector<128x32xf32>
    %44 = vector.broadcast %3 : vector<1x32xf32> to vector<128x32xf32>
    %45 = arith.mulf %43, %44 : vector<128x32xf32>
    %46 = vector.broadcast %4 : vector<1x32xf32> to vector<128x32xf32>
    %47 = arith.addf %45, %46 : vector<128x32xf32>
    %cst_31 = arith.constant 0.000000e+00 : f32
    %48 = vector.broadcast %cst_31 : f32 to vector<128x32xf32>
    %49 = arith.cmpf oge, %47, %48 : vector<128x32xf32>
    %cst_32 = arith.constant 0.00999999977 : f32
    %50 = vector.broadcast %cst_32 : f32 to vector<128x32xf32>
    %51 = arith.mulf %50, %47 : vector<128x32xf32>
    %52 = arith.select %49, %47, %51 : vector<128x32xi1>, vector<128x32xf32>
    %c0_33 = arith.constant 0 : index
    %c0_34 = arith.constant 0 : index
    %53 = vector.load %arg8[%c0_33, %c0_34] : memref<32x32xf32, #tpu.memory_space<vmem>>, vector<32x32xf32>
    %cst_35 = arith.constant dense<0.000000e+00> : vector<128x32xf32>
    %54 = tpu.matmul %52, %53, %cst_35 {dimension_numbers = #tpu.dot_dimension_numbers<[1], [0], [0], [1], [0, 0, 1, 1], [], []>} : vector<128x32xf32>, vector<32x32xf32>, vector<128x32xf32> -> vector<128x32xf32>
    %55 = vector.broadcast %5 : vector<1x32xf32> to vector<128x32xf32>
    %56 = arith.addf %54, %55 : vector<128x32xf32>
    %57 = vector.broadcast %6 : vector<1x32xf32> to vector<128x32xf32>
    %58 = arith.mulf %56, %57 : vector<128x32xf32>
    %59 = vector.broadcast %7 : vector<1x32xf32> to vector<128x32xf32>
    %60 = arith.addf %58, %59 : vector<128x32xf32>
    %cst_36 = arith.constant 0.000000e+00 : f32
    %61 = vector.broadcast %cst_36 : f32 to vector<128x32xf32>
    %62 = arith.cmpf oge, %60, %61 : vector<128x32xf32>
    %cst_37 = arith.constant 0.00999999977 : f32
    %63 = vector.broadcast %cst_37 : f32 to vector<128x32xf32>
    %64 = arith.mulf %63, %60 : vector<128x32xf32>
    %65 = arith.select %62, %60, %64 : vector<128x32xi1>, vector<128x32xf32>
    %66 = vector.shape_cast %65 : vector<128x32xf32> to vector<4x32x32xf32>
    %67 = vector.shape_cast %37 : vector<128x32xf32> to vector<4x32x32xf32>
    %cst_38 = arith.constant dense<0xFF800000> : vector<32x32xf32>
    %68 = vector.multi_reduction <maximumf>, %66, %cst_38 [0] : vector<4x32x32xf32> to vector<32x32xf32>
    %69 = vector.shape_cast %68 : vector<32x32xf32> to vector<1x32x32xf32>
    %70 = vector.broadcast %69 : vector<1x32x32xf32> to vector<4x32x32xf32>
    %71 = arith.subf %66, %70 : vector<4x32x32xf32>
    %72 = math.exp %71 : vector<4x32x32xf32>
    %cst_39 = arith.constant dense<0.000000e+00> : vector<32x32xf32>
    %73 = vector.multi_reduction <add>, %72, %cst_39 [0] : vector<4x32x32xf32> to vector<32x32xf32>
    %74 = arith.mulf %72, %67 : vector<4x32x32xf32>
    %cst_40 = arith.constant dense<0.000000e+00> : vector<32x32xf32>
    %75 = vector.multi_reduction <add>, %74, %cst_40 [0] : vector<4x32x32xf32> to vector<32x32xf32>
    %76 = tpu.reciprocal %73 {approx = true} : vector<32x32xf32> -> vector<32x32xf32>
    %77 = arith.mulf %75, %76 : vector<32x32xf32>
    %c0_41 = arith.constant 0 : index
    %c0_42 = arith.constant 0 : index
    %78 = vector.load %arg11[%c0_41, %c0_42] : memref<32x32xf32, #tpu.memory_space<vmem>>, vector<32x32xf32>
    tpu.vector_store %arg11[%c0_41, %c0_42], %77 {strides = array<i32>} : memref<32x32xf32, #tpu.memory_space<vmem>>, vector<32x32xf32>,
    return
  }
  func.func @transform_0(%arg0: i32) -> (i32, i32) {
    %c0_i32 = arith.constant 0 : i32
    %c0_i32_0 = arith.constant 0 : i32
    return %arg0, %c0_i32 : i32, i32
  }
  func.func @transform_1(%arg0: i32) -> (i32, i32, i32) {
    %c0_i32 = arith.constant 0 : i32
    %c0_i32_0 = arith.constant 0 : i32
    %c0_i32_1 = arith.constant 0 : i32
    return %c0_i32, %arg0, %c0_i32_0 : i32, i32, i32
  }
  func.func @transform_2(%arg0: i32) -> (i32, i32, i32) {
    %c0_i32 = arith.constant 0 : i32
    %c0_i32_0 = arith.constant 0 : i32
    %c0_i32_1 = arith.constant 0 : i32
    return %c0_i32, %arg0, %c0_i32_0 : i32, i32, i32
  }
  func.func @transform_3(%arg0: i32) -> (i32, i32) {
    %c0_i32 = arith.constant 0 : i32
    %c0_i32_0 = arith.constant 0 : i32
    %c0_i32_1 = arith.constant 0 : i32
    return %c0_i32, %c0_i32_0 : i32, i32
  }
  func.func @transform_4(%arg0: i32) -> (i32, i32) {
    %c0_i32 = arith.constant 0 : i32
    %c0_i32_0 = arith.constant 0 : i32
    %c0_i32_1 = arith.constant 0 : i32
    return %c0_i32, %c0_i32_0 : i32, i32
  }
  func.func @transform_5(%arg0: i32) -> (i32, i32) {
    %c0_i32 = arith.constant 0 : i32
    %c0_i32_0 = arith.constant 0 : i32
    %c0_i32_1 = arith.constant 0 : i32
    return %c0_i32, %c0_i32_0 : i32, i32
  }
  func.func @transform_6(%arg0: i32) -> (i32, i32) {
    %c0_i32 = arith.constant 0 : i32
    %c0_i32_0 = arith.constant 0 : i32
    %c0_i32_1 = arith.constant 0 : i32
    return %c0_i32, %c0_i32_0 : i32, i32
  }
  func.func @transform_7(%arg0: i32) -> (i32, i32) {
    %c0_i32 = arith.constant 0 : i32
    %c0_i32_0 = arith.constant 0 : i32
    %c0_i32_1 = arith.constant 0 : i32
    return %c0_i32, %c0_i32_0 : i32, i32
  }
  func.func @transform_8(%arg0: i32) -> (i32, i32) {
    %c0_i32 = arith.constant 0 : i32
    %c0_i32_0 = arith.constant 0 : i32
    %c0_i32_1 = arith.constant 0 : i32
    return %c0_i32, %c0_i32_0 : i32, i32
  }
  func.func @transform_9(%arg0: i32) -> (i32, i32) {
    %c0_i32 = arith.constant 0 : i32
    %c0_i32_0 = arith.constant 0 : i32
    %c0_i32_1 = arith.constant 0 : i32
    return %c0_i32, %c0_i32_0 : i32, i32
  }
  func.func @transform_10(%arg0: i32) -> (i32, i32) {
    %c0_i32 = arith.constant 0 : i32
    %c0_i32_0 = arith.constant 0 : i32
    return %arg0, %c0_i32 : i32, i32
  }
}

</mosaic_0001>

<llo_original>
// kernel: tpu_custom_call.1
$region0: #{tpu_custom_call.1}
  #allocation0 [shape = 'u32[]', space=smem, size = 0x4, offset = 0x4, fixed_abs, tag = 'smem constant byte address 0x4 - core index']
  #allocation1 [shape = 'u32[144,128]{1,0:T(1,128)}', space=vmem, size = 0x12000, scoped, tag = 'internal scratch']
  %s0 = inlined_call_operand.vmem [shape: f32[64,32], index: 0, kind: input, shape index: {}]
  %s1 = inlined_call_operand.vmem [shape: f32[4,64,32], index: 1, kind: input, shape index: {}]
  %s2 = inlined_call_operand.vmem [shape: f32[4,64,4], index: 2, kind: input, shape index: {}]
  %s3 = inlined_call_operand.vmem [shape: f32[32,32], index: 3, kind: input, shape index: {}]
  %s4 = inlined_call_operand.vmem [shape: f32[32,64], index: 4, kind: input, shape index: {}]
  %s5 = inlined_call_operand.vmem [shape: f32[4,64], index: 5, kind: input, shape index: {}]
  %s6 = inlined_call_operand.vmem [shape: f32[64,32], index: 6, kind: input, shape index: {}]
  %s7 = inlined_call_operand.vmem [shape: f32[32,32], index: 7, kind: input, shape index: {}]
  %s8 = inlined_call_operand.vmem [shape: f32[8,32], index: 8, kind: input, shape index: {}]
  %s9 = inlined_call_operand.vmem [shape: f32[1,64], index: 9, kind: input, shape index: {}]
  %s10 = inlined_call_operand.vmem [shape: f32[64,32], index: 10, kind: output, shape index: {}]
  %s11 = sld [smem:[#allocation0]]
  $region149: #{tpu_custom_call.1} parent=0
    _
  %s13 = ssub.s32 1, %s11
  %s14 = scalar_select 0, %s13, %s11
  $region1: #{tpu_custom_call.1} parent=0
    #allocation2 [shape = 'u8[131072]{0}', space=vmem, size = 0x20000, scoped, tag = 'input window, operand 1']
    #allocation3 [shape = 'u8[131072]{0}', space=vmem, size = 0x20000, scoped, tag = 'input window, operand 2']
    loop: start=0, step=1, limit=4
    $region2: #{tpu_custom_call.1} parent=1 // loop_pre_header
      _
    $region3: #{tpu_custom_call.1} parent=1 // loop_header
      %s16 = sphi 0, %s20
      %p17 = scmp.ge.s32.totalorder %s16, 4
      %s26 = sphi 0, %s28
      %s29 = sphi 0, %s26
      %s30 = sphi 0, %s29
      %s46 = sphi 0, %s30
      %s52 = sphi 0, %s54
      %s55 = sphi 0, %s52
      %s56 = sphi 0, %s55
      %s72 = sphi 0, %s56
      %s78 = sphi 0, %s80
      %s81 = sphi 0, %s78
      %s82 = sphi 0, %s81
      %s98 = sphi 0, %s82
      %s102 = sphi 0, %s102
      %s104 = sphi 0, %s102
      %s105 = sphi 0, %s104
      %s119 = sphi 0, %s105
      %s123 = sphi 0, %s123
      %s125 = sphi 0, %s123
      %s126 = sphi 0, %s125
      %s140 = sphi 0, %s126
      %s144 = sphi 0, %s144
      %s146 = sphi 0, %s144
      %s147 = sphi 0, %s146
      %s161 = sphi 0, %s147
      %s165 = sphi 0, %s165
      %s167 = sphi 0, %s165
      %s168 = sphi 0, %s167
      %s182 = sphi 0, %s168
      %s186 = sphi 0, %s186
      %s188 = sphi 0, %s186
      %s189 = sphi 0, %s188
      %s203 = sphi 0, %s189
      %s207 = sphi 0, %s207
      %s209 = sphi 0, %s207
      %s210 = sphi 0, %s209
      %s224 = sphi 0, %s210
      %s228 = sphi 0, %s228
      %s230 = sphi 0, %s228
      %s231 = sphi 0, %s230
      %s245 = sphi 0, %s231
      %s251 = sphi 0, %s253
      %s254 = sphi 0, %s251
      %s255 = sphi 0, %s254
      %s271 = sphi 0, %s255
    $region4: #{tpu_custom_call.1} parent=1 // loop_header_branch
      %19 = sbr.rel (%p17) target = $region8
    $region5: #{tpu_custom_call.1} parent=1 // loop_body
      %s21 = ssub.s32 %s16, 1
      %s22 = ssub.s32 %s16, 2
      %s23 = sadd.s32 %s16, 1
      %s24 = ssub.s32 %s16, %s23
      %p25 = scmp.eq.s32.totalorder %s24, 0
      %s27 = sadd.s32 %s26, 1
      %s28 = scalar_select %p25, %s26, %s27
      %p31 = pneg %p25
      %p32 = scmp.eq.s32.totalorder %s16, 1
      %p33 = por %p31, %p32
      %p34 = scmp.ne.s32.totalorder %s26, %s29
      %p35 = scmp.eq.s32.totalorder %s16, 0
      %p36 = por %p34, %p35
      %p37 = scmp.ne.s32.totalorder %s26, %s29
      %p38 = scmp.eq.s32.totalorder %s21, 1
      %p39 = por %p37, %p38
      %p40 = scmp.ne.s32.totalorder %s29, %s30
      %p41 = scmp.eq.s32.totalorder %s21, 0
      %p42 = por %p40, %p41
      %p43 = scmp.ne.s32.totalorder %s29, %s30
      %p44 = scmp.eq.s32.totalorder %s22, 1
      %p45 = por %p43, %p44
      %p47 = scmp.ne.s32.totalorder %s30, %s46
      %p48 = scmp.eq.s32.totalorder %s22, 0
      %p49 = por %p47, %p48
      %s50 = ssub.s32 %s16, %s23
      %p51 = scmp.eq.s32.totalorder %s50, 0
      %s53 = sadd.s32 %s52, 1
      %s54 = scalar_select %p51, %s52, %s53
      %p57 = pneg %p51
      %p58 = scmp.eq.s32.totalorder %s16, 1
      %p59 = por %p57, %p58
      %p60 = scmp.ne.s32.totalorder %s52, %s55
      %p61 = scmp.eq.s32.totalorder %s16, 0
      %p62 = por %p60, %p61
      %p63 = scmp.ne.s32.totalorder %s52, %s55
      %p64 = scmp.eq.s32.totalorder %s21, 1
      %p65 = por %p63, %p64
      %p66 = scmp.ne.s32.totalorder %s55, %s56
      %p67 = scmp.eq.s32.totalorder %s21, 0
      %p68 = por %p66, %p67
      %p69 = scmp.ne.s32.totalorder %s55, %s56
      %p70 = scmp.eq.s32.totalorder %s22, 1
      %p71 = por %p69, %p70
      %p73 = scmp.ne.s32.totalorder %s56, %s72
      %p74 = scmp.eq.s32.totalorder %s22, 0
      %p75 = por %p73, %p74
      %s76 = ssub.s32 %s16, %s23
      %p77 = scmp.eq.s32.totalorder %s76, 0
      %s79 = sadd.s32 %s78, 1
      %s80 = scalar_select %p77, %s78, %s79
      %p83 = pneg %p77
      %p84 = scmp.eq.s32.totalorder %s16, 1
      %p85 = por %p83, %p84
      %p86 = scmp.ne.s32.totalorder %s78, %s81
      %p87 = scmp.eq.s32.totalorder %s16, 0
      %p88 = por %p86, %p87
      %p89 = scmp.ne.s32.totalorder %s78, %s81
      %p90 = scmp.eq.s32.totalorder %s21, 1
      %p91 = por %p89, %p90
      %p92 = scmp.ne.s32.totalorder %s81, %s82
      %p93 = scmp.eq.s32.totalorder %s21, 0
      %p94 = por %p92, %p93
      %p95 = scmp.ne.s32.totalorder %s81, %s82
      %p96 = scmp.eq.s32.totalorder %s22, 1
      %p97 = por %p95, %p96
      %p99 = scmp.ne.s32.totalorder %s82, %s98
      %p100 = scmp.eq.s32.totalorder %s22, 0
      %p101 = por %p99, %p100
      %s103 = sadd.s32 %s102, 1
      %p106 = scmp.eq.s32.totalorder %s16, 1
      %p107 = scmp.ne.s32.totalorder %s102, %s104
      %p108 = scmp.eq.s32.totalorder %s16, 0
      %p109 = por %p107, %p108
      %p110 = scmp.ne.s32.totalorder %s102, %s104
      %p111 = scmp.eq.s32.totalorder %s21, 1
      %p112 = por %p110, %p111
      %p113 = scmp.ne.s32.totalorder %s104, %s105
      %p114 = scmp.eq.s32.totalorder %s21, 0
      %p115 = por %p113, %p114
      %p116 = scmp.ne.s32.totalorder %s104, %s105
      %p117 = scmp.eq.s32.totalorder %s22, 1
      %p118 = por %p116, %p117
      %p120 = scmp.ne.s32.totalorder %s105, %s119
      %p121 = scmp.eq.s32.totalorder %s22, 0
      %p122 = por %p120, %p121
      %s124 = sadd.s32 %s123, 1
      %p127 = scmp.eq.s32.totalorder %s16, 1
      %p128 = scmp.ne.s32.totalorder %s123, %s125
      %p129 = scmp.eq.s32.totalorder %s16, 0
      %p130 = por %p128, %p129
      %p131 = scmp.ne.s32.totalorder %s123, %s125
      %p132 = scmp.eq.s32.totalorder %s21, 1
      %p133 = por %p131, %p132
      %p134 = scmp.ne.s32.totalorder %s125, %s126
      %p135 = scmp.eq.s32.totalorder %s21, 0
      %p136 = por %p134, %p135
      %p137 = scmp.ne.s32.totalorder %s125, %s126
      %p138 = scmp.eq.s32.totalorder %s22, 1
      %p139 = por %p137, %p138
      %p141 = scmp.ne.s32.totalorder %s126, %s140
      %p142 = scmp.eq.s32.totalorder %s22, 0
      %p143 = por %p141, %p142
      %s145 = sadd.s32 %s144, 1
      %p148 = scmp.eq.s32.totalorder %s16, 1
      %p149 = scmp.ne.s32.totalorder %s144, %s146
      %p150 = scmp.eq.s32.totalorder %s16, 0
      %p151 = por %p149, %p150
      %p152 = scmp.ne.s32.totalorder %s144, %s146
      %p153 = scmp.eq.s32.totalorder %s21, 1
      %p154 = por %p152, %p153
      %p155 = scmp.ne.s32.totalorder %s146, %s147
      %p156 = scmp.eq.s32.totalorder %s21, 0
      %p157 = por %p155, %p156
      %p158 = scmp.ne.s32.totalorder %s146, %s147
      %p159 = scmp.eq.s32.totalorder %s22, 1
      %p160 = por %p158, %p159
      %p162 = scmp.ne.s32.totalorder %s147, %s161
      %p163 = scmp.eq.s32.totalorder %s22, 0
      %p164 = por %p162, %p163
      %s166 = sadd.s32 %s165, 1
      %p169 = scmp.eq.s32.totalorder %s16, 1
      %p170 = scmp.ne.s32.totalorder %s165, %s167
      %p171 = scmp.eq.s32.totalorder %s16, 0
      %p172 = por %p170, %p171
      %p173 = scmp.ne.s32.totalorder %s165, %s167
      %p174 = scmp.eq.s32.totalorder %s21, 1
      %p175 = por %p173, %p174
      %p176 = scmp.ne.s32.totalorder %s167, %s168
      %p177 = scmp.eq.s32.totalorder %s21, 0
      %p178 = por %p176, %p177
      %p179 = scmp.ne.s32.totalorder %s167, %s168
      %p180 = scmp.eq.s32.totalorder %s22, 1
      %p181 = por %p179, %p180
      %p183 = scmp.ne.s32.totalorder %s168, %s182
      %p184 = scmp.eq.s32.totalorder %s22, 0
      %p185 = por %p183, %p184
      %s187 = sadd.s32 %s186, 1
      %p190 = scmp.eq.s32.totalorder %s16, 1
      %p191 = scmp.ne.s32.totalorder %s186, %s188
      %p192 = scmp.eq.s32.totalorder %s16, 0
      %p193 = por %p191, %p192
      %p194 = scmp.ne.s32.totalorder %s186, %s188
      %p195 = scmp.eq.s32.totalorder %s21, 1
      %p196 = por %p194, %p195
      %p197 = scmp.ne.s32.totalorder %s188, %s189
      %p198 = scmp.eq.s32.totalorder %s21, 0
      %p199 = por %p197, %p198
      %p200 = scmp.ne.s32.totalorder %s188, %s189
      %p201 = scmp.eq.s32.totalorder %s22, 1
      %p202 = por %p200, %p201
      %p204 = scmp.ne.s32.totalorder %s189, %s203
      %p205 = scmp.eq.s32.totalorder %s22, 0
      %p206 = por %p204, %p205
      %s208 = sadd.s32 %s207, 1
      %p211 = scmp.eq.s32.totalorder %s16, 1
      %p212 = scmp.ne.s32.totalorder %s207, %s209
      %p213 = scmp.eq.s32.totalorder %s16, 0
      %p214 = por %p212, %p213
      %p215 = scmp.ne.s32.totalorder %s207, %s209
      %p216 = scmp.eq.s32.totalorder %s21, 1
      %p217 = por %p215, %p216
      %p218 = scmp.ne.s32.totalorder %s209, %s210
      %p219 = scmp.eq.s32.totalorder %s21, 0
      %p220 = por %p218, %p219
      %p221 = scmp.ne.s32.totalorder %s209, %s210
      %p222 = scmp.eq.s32.totalorder %s22, 1
      %p223 = por %p221, %p222
      %p225 = scmp.ne.s32.totalorder %s210, %s224
      %p226 = scmp.eq.s32.totalorder %s22, 0
      %p227 = por %p225, %p226
      %s229 = sadd.s32 %s228, 1
      %p232 = scmp.eq.s32.totalorder %s16, 1
      %p233 = scmp.ne.s32.totalorder %s228, %s230
      %p234 = scmp.eq.s32.totalorder %s16, 0
      %p235 = por %p233, %p234
      %p236 = scmp.ne.s32.totalorder %s228, %s230
      %p237 = scmp.eq.s32.totalorder %s21, 1
      %p238 = por %p236, %p237
      %p239 = scmp.ne.s32.totalorder %s230, %s231
      %p240 = scmp.eq.s32.totalorder %s21, 0
      %p241 = por %p239, %p240
      %p242 = scmp.ne.s32.totalorder %s230, %s231
      %p243 = scmp.eq.s32.totalorder %s22, 1
      %p244 = por %p242, %p243
      %p246 = scmp.ne.s32.totalorder %s231, %s245
      %p247 = scmp.eq.s32.totalorder %s22, 0
      %p248 = por %p246, %p247
      %s249 = ssub.s32 %s16, %s23
      %p250 = scmp.eq.s32.totalorder %s249, 0
      %s252 = sadd.s32 %s251, 1
      %s253 = scalar_select %p250, %s251, %s252
      %p256 = pneg %p250
      %p257 = scmp.eq.s32.totalorder %s16, 1
      %p258 = por %p256, %p257
      %p259 = scmp.ne.s32.totalorder %s251, %s254
      %p260 = scmp.eq.s32.totalorder %s16, 0
      %p261 = por %p259, %p260
      %p262 = scmp.ne.s32.totalorder %s251, %s254
      %p263 = scmp.eq.s32.totalorder %s21, 1
      %p264 = por %p262, %p263
      %p265 = scmp.ne.s32.totalorder %s254, %s255
      %p266 = scmp.eq.s32.totalorder %s21, 0
      %p267 = por %p265, %p266
      %p268 = scmp.ne.s32.totalorder %s254, %s255
      %p269 = scmp.eq.s32.totalorder %s22, 1
      %p270 = por %p268, %p269
      %p272 = scmp.ne.s32.totalorder %s255, %s271
      %p273 = scmp.eq.s32.totalorder %s22, 0
      %p274 = por %p272, %p273
      %p275 = scmp.le.s32.totalorder 1, %s16
      %p276 = scmp.lt.s32.totalorder %s16, 3
      %p277 = pnand %p275, %p276
      %p278 = pneg %p277
      // Predicated region
      $region9: #{tpu_custom_call.1} parent=5 // pred_check
        _
      $region10: #{tpu_custom_call.1} parent=5 // pred_check_branch
        %280 = sbr.rel (%p277) target = $region12
      $region11: #{tpu_custom_call.1} parent=5 // pred_region
        %s281 = ssub.s32 %s16, 1
        // Predicated region
        $region13: #{tpu_custom_call.1} parent=11 // pred_check
          %p282 = pneg %p115
        $region14: #{tpu_custom_call.1} parent=11 // pred_check_branch
          %284 = sbr.rel (%p282) target = $region16
        $region15: #{tpu_custom_call.1} parent=11 // pred_region
          _
        $region16: #{tpu_custom_call.1} parent=11 // pred_fallthru
          _
        // Predicated region
        $region17: #{tpu_custom_call.1} parent=11 // pred_check
          %p285 = pneg %p136
        $region18: #{tpu_custom_call.1} parent=11 // pred_check_branch
          %287 = sbr.rel (%p285) target = $region20
        $region19: #{tpu_custom_call.1} parent=11 // pred_region
          _
        $region20: #{tpu_custom_call.1} parent=11 // pred_fallthru
          _
        // Predicated region
        $region21: #{tpu_custom_call.1} parent=11 // pred_check
          %p288 = pneg %p157
        $region22: #{tpu_custom_call.1} parent=11 // pred_check_branch
          %290 = sbr.rel (%p288) target = $region24
        $region23: #{tpu_custom_call.1} parent=11 // pred_region
          _
        $region24: #{tpu_custom_call.1} parent=11 // pred_fallthru
          _
        // Predicated region
        $region25: #{tpu_custom_call.1} parent=11 // pred_check
          %p291 = pneg %p178
        $region26: #{tpu_custom_call.1} parent=11 // pred_check_branch
          %293 = sbr.rel (%p291) target = $region28
        $region27: #{tpu_custom_call.1} parent=11 // pred_region
          _
        $region28: #{tpu_custom_call.1} parent=11 // pred_fallthru
          _
        // Predicated region
        $region29: #{tpu_custom_call.1} parent=11 // pred_check
          %p294 = pneg %p199
        $region30: #{tpu_custom_call.1} parent=11 // pred_check_branch
          %296 = sbr.rel (%p294) target = $region32
        $region31: #{tpu_custom_call.1} parent=11 // pred_region
          _
        $region32: #{tpu_custom_call.1} parent=11 // pred_fallthru
          _
        // Predicated region
        $region33: #{tpu_custom_call.1} parent=11 // pred_check
          %p297 = pneg %p220
        $region34: #{tpu_custom_call.1} parent=11 // pred_check_branch
          %299 = sbr.rel (%p297) target = $region36
        $region35: #{tpu_custom_call.1} parent=11 // pred_region
          _
        $region36: #{tpu_custom_call.1} parent=11 // pred_fallthru
          _
        // Predicated region
        $region37: #{tpu_custom_call.1} parent=11 // pred_check
          %p300 = pneg %p241
        $region38: #{tpu_custom_call.1} parent=11 // pred_check_branch
          %302 = sbr.rel (%p300) target = $region40
        $region39: #{tpu_custom_call.1} parent=11 // pred_region
          _
        $region40: #{tpu_custom_call.1} parent=11 // pred_fallthru
          _
      $region12: #{tpu_custom_call.1} parent=5 // pred_fallthru
        _
      %p303 = scmp.lt.s32.totalorder %s16, 2
      // Predicated region
      $region41: #{tpu_custom_call.1} parent=5 // pred_check
        %p304 = pneg %p303
      $region42: #{tpu_custom_call.1} parent=5 // pred_check_branch
        %306 = sbr.rel (%p304) target = $region44
      $region43: #{tpu_custom_call.1} parent=5 // pred_region
        // Predicated region
        $region45: #{tpu_custom_call.1} parent=43 // pred_check
          %p307 = pneg %p36
        $region46: #{tpu_custom_call.1} parent=43 // pred_check_branch
          %309 = sbr.rel (%p307) target = $region48
        $region47: #{tpu_custom_call.1} parent=43 // pred_region
          %s310 = smul.u32 4, %s16
          %p311 = scmp.lt.s32.totalorder %s310, 7
          %s312 = scalar_select %p311, %s310, 7
          %s313 = smul.addr %s312, 8
          %s314 = scalar_lea.vmem %s0, %s313
          %s315 = smul.u32 4, %s16
        $region48: #{tpu_custom_call.1} parent=43 // pred_fallthru
          _
        // Predicated region
        $region49: #{tpu_custom_call.1} parent=43 // pred_check
          %p316 = pneg %p62
        $region50: #{tpu_custom_call.1} parent=43 // pred_check_branch
          %318 = sbr.rel (%p316) target = $region52
        $region51: #{tpu_custom_call.1} parent=43 // pred_region
          %s319 = sand.u32 %s52, 1
          %s320 = sand.u32 %s52, 1
          %s321 = smul.addr %s320, 128
          %s322 = scalar_lea.vmem [#allocation2], %s321
          %s323 = smul.u32 4, %s16
          %s324 = smul.addr %s323, 8
          %s325 = scalar_lea.vmem %s1, %s324
          // Predicated region
          $region53: #{tpu_custom_call.1} parent=51 // pred_check
            _
          $region54: #{tpu_custom_call.1} parent=51 // pred_check_branch
            %327 = sbr.rel (0) target = $region56
          $region55: #{tpu_custom_call.1} parent=51 // pred_region
            // Predicated region
            $region57: #{tpu_custom_call.1} parent=55 // pred_check
              _
            $region58: #{tpu_custom_call.1} parent=55 // pred_check_branch
              %329 = sbr.rel (0) target = $region60
            $region59: #{tpu_custom_call.1} parent=55 // pred_region
              // Predicated region
              $region72: #{tpu_custom_call.1} parent=59 // pred_check
                _
              $region73: #{tpu_custom_call.1} parent=59 // pred_check_branch
                %374 = sbr.rel (0) target = $region75
              $region74: #{tpu_custom_call.1} parent=59 // pred_region
                loop: start=0, step=1, limit=1
                $region76: #{tpu_custom_call.1} parent=74 // loop_pre_header
                  _
                $region77: #{tpu_custom_call.1} parent=74 // loop_header
                  %s376 = sphi 0, %s380
                  %p377 = scmp.ge.s32.totalorder %s376, 1
                  %s381 = sphi %s325, %s325
                  %s382 = sphi %s322, %s322
                $region78: #{tpu_custom_call.1} parent=74 // loop_header_branch
                  %379 = sbr.rel (%p377) target = $region82
                $region79: #{tpu_custom_call.1} parent=74 // loop_body
                  %v383 = vld [vmem:[%s381] sm:$0xff]
                  %384 = vst [vmem:[%s382] sm:$0xff] %v383
                  %v385 = vld [vmem:[%s381 + $0x8] sm:$0xff]
                  %386 = vst [vmem:[%s382 + $0x8] sm:$0xff] %v385
                  %v387 = vld [vmem:[%s381 + $0x10] sm:$0xff]
                  %388 = vst [vmem:[%s382 + $0x10] sm:$0xff] %v387
                  %v389 = vld [vmem:[%s381 + $0x18] sm:$0xff]
                  %390 = vst [vmem:[%s382 + $0x18] sm:$0xff] %v389
                  %v391 = vld [vmem:[%s381 + $0x40] sm:$0xff]
                  %392 = vst [vmem:[%s382 + $0x20] sm:$0xff] %v391
                  %v393 = vld [vmem:[%s381 + $0x48] sm:$0xff]
                  %394 = vst [vmem:[%s382 + $0x28] sm:$0xff] %v393
                  %v395 = vld [vmem:[%s381 + $0x50] sm:$0xff]
                  %396 = vst [vmem:[%s382 + $0x30] sm:$0xff] %v395
                  %v397 = vld [vmem:[%s381 + $0x58] sm:$0xff]
                  %398 = vst [vmem:[%s382 + $0x38] sm:$0xff] %v397
                  %v399 = vld [vmem:[%s381 + $0x80] sm:$0xff]
                  %400 = vst [vmem:[%s382 + $0x40] sm:$0xff] %v399
                  %v401 = vld [vmem:[%s381 + $0x88] sm:$0xff]
                  %402 = vst [vmem:[%s382 + $0x48] sm:$0xff] %v401
                  %v403 = vld [vmem:[%s381 + $0x90] sm:$0xff]
                  %404 = vst [vmem:[%s382 + $0x50] sm:$0xff] %v403
                  %v405 = vld [vmem:[%s381 + $0x98] sm:$0xff]
                  %406 = vst [vmem:[%s382 + $0x58] sm:$0xff] %v405
                  %v407 = vld [vmem:[%s381 + $0xc0] sm:$0xff]
                  %408 = vst [vmem:[%s382 + $0x60] sm:$0xff] %v407
                  %v409 = vld [vmem:[%s381 + $0xc8] sm:$0xff]
                  %410 = vst [vmem:[%s382 + $0x68] sm:$0xff] %v409
                  %v411 = vld [vmem:[%s381 + $0xd0] sm:$0xff]
                  %412 = vst [vmem:[%s382 + $0x70] sm:$0xff] %v411
                  %v413 = vld [vmem:[%s381 + $0xd8] sm:$0xff]
                  %414 = vst [vmem:[%s382 + $0x78] sm:$0xff] %v413
                $region80: #{tpu_custom_call.1} parent=74 // loop_footer
                  %s380 = sadd.s32 1, %s376
                $region81: #{tpu_custom_call.1} parent=74 // loop_footer_branch
                  %375 = sbr.rel target = $region77
                $region82: #{tpu_custom_call.1} parent=74 // loop_exit
                  _
              $region75: #{tpu_custom_call.1} parent=59 // pred_fallthru
                _
              // Predicated region
              $region83: #{tpu_custom_call.1} parent=59 // pred_check
                _
              $region84: #{tpu_custom_call.1} parent=59 // pred_check_branch
                %416 = sbr.rel target = $region86
              $region85: #{tpu_custom_call.1} parent=59 // pred_region
                _
              $region86: #{tpu_custom_call.1} parent=59 // pred_fallthru
                _
            $region60: #{tpu_custom_call.1} parent=55 // pred_fallthru
              _
            // Predicated region
            $region61: #{tpu_custom_call.1} parent=55 // pred_check
              _
            $region62: #{tpu_custom_call.1} parent=55 // pred_check_branch
              %331 = sbr.rel target = $region64
            $region63: #{tpu_custom_call.1} parent=55 // pred_region
              loop: start=0, step=1, limit=1
              $region65: #{tpu_custom_call.1} parent=63 // loop_pre_header
                _
              $region66: #{tpu_custom_call.1} parent=63 // loop_header
                %s334 = sphi 0, %s338
                %p335 = scmp.ge.s32.totalorder %s334, 1
                %s339 = sphi %s325, %s325
                %s340 = sphi %s322, %s322
              $region67: #{tpu_custom_call.1} parent=63 // loop_header_branch
                %337 = sbr.rel (%p335) target = $region71
              $region68: #{tpu_custom_call.1} parent=63 // loop_body
                %v341 = vld [vmem:[%s339] sm:$0xff]
                %342 = vst [vmem:[%s340] sm:$0xff] %v341
                %v343 = vld [vmem:[%s339 + $0x8] sm:$0xff]
                %344 = vst [vmem:[%s340 + $0x8] sm:$0xff] %v343
                %v345 = vld [vmem:[%s339 + $0x10] sm:$0xff]
                %346 = vst [vmem:[%s340 + $0x10] sm:$0xff] %v345
                %v347 = vld [vmem:[%s339 + $0x18] sm:$0xff]
                %348 = vst [vmem:[%s340 + $0x18] sm:$0xff] %v347
                %v349 = vld [vmem:[%s339 + $0x40] sm:$0xff]
                %350 = vst [vmem:[%s340 + $0x20] sm:$0xff] %v349
                %v351 = vld [vmem:[%s339 + $0x48] sm:$0xff]
                %352 = vst [vmem:[%s340 + $0x28] sm:$0xff] %v351
                %v353 = vld [vmem:[%s339 + $0x50] sm:$0xff]
                %354 = vst [vmem:[%s340 + $0x30] sm:$0xff] %v353
                %v355 = vld [vmem:[%s339 + $0x58] sm:$0xff]
                %356 = vst [vmem:[%s340 + $0x38] sm:$0xff] %v355
                %v357 = vld [vmem:[%s339 + $0x80] sm:$0xff]
                %358 = vst [vmem:[%s340 + $0x40] sm:$0xff] %v357
                %v359 = vld [vmem:[%s339 + $0x88] sm:$0xff]
                %360 = vst [vmem:[%s340 + $0x48] sm:$0xff] %v359
                %v361 = vld [vmem:[%s339 + $0x90] sm:$0xff]
                %362 = vst [vmem:[%s340 + $0x50] sm:$0xff] %v361
                %v363 = vld [vmem:[%s339 + $0x98] sm:$0xff]
                %364 = vst [vmem:[%s340 + $0x58] sm:$0xff] %v363
                %v365 = vld [vmem:[%s339 + $0xc0] sm:$0xff]
                %366 = vst [vmem:[%s340 + $0x60] sm:$0xff] %v365
                %v367 = vld [vmem:[%s339 + $0xc8] sm:$0xff]
                %368 = vst [vmem:[%s340 + $0x68] sm:$0xff] %v367
                %v369 = vld [vmem:[%s339 + $0xd0] sm:$0xff]
                %370 = vst [vmem:[%s340 + $0x70] sm:$0xff] %v369
                %v371 = vld [vmem:[%s339 + $0xd8] sm:$0xff]
                %372 = vst [vmem:[%s340 + $0x78] sm:$0xff] %v371
              $region69: #{tpu_custom_call.1} parent=63 // loop_footer
                %s338 = sadd.s32 1, %s334
              $region70: #{tpu_custom_call.1} parent=63 // loop_footer_branch
                %333 = sbr.rel target = $region66
              $region71: #{tpu_custom_call.1} parent=63 // loop_exit
                _
            $region64: #{tpu_custom_call.1} parent=55 // pred_fallthru
              _
          $region56: #{tpu_custom_call.1} parent=51 // pred_fallthru
            _
          %417 = vnop
        $region52: #{tpu_custom_call.1} parent=43 // pred_fallthru
          _
        // Predicated region
        $region87: #{tpu_custom_call.1} parent=43 // pred_check
          %p418 = pneg %p88
        $region88: #{tpu_custom_call.1} parent=43 // pred_check_branch
          %420 = sbr.rel (%p418) target = $region90
        $region89: #{tpu_custom_call.1} parent=43 // pred_region
          %s421 = sand.u32 %s78, 1
          %s422 = sand.u32 %s78, 1
          %s423 = smul.addr %s422, 128
          %s424 = scalar_lea.vmem [#allocation3], %s423
          %s425 = smul.u32 4, %s16
          %s426 = smul.addr %s425, 8
          %s427 = scalar_lea.vmem %s2, %s426
          // Predicated region
          $region91: #{tpu_custom_call.1} parent=89 // pred_check
            _
          $region92: #{tpu_custom_call.1} parent=89 // pred_check_branch
            %429 = sbr.rel (0) target = $region94
          $region93: #{tpu_custom_call.1} parent=89 // pred_region
            // Predicated region
            $region95: #{tpu_custom_call.1} parent=93 // pred_check
              _
            $region96: #{tpu_custom_call.1} parent=93 // pred_check_branch
              %431 = sbr.rel (0) target = $region98
            $region97: #{tpu_custom_call.1} parent=93 // pred_region
              // Predicated region
              $region110: #{tpu_custom_call.1} parent=97 // pred_check
                _
              $region111: #{tpu_custom_call.1} parent=97 // pred_check_branch
                %476 = sbr.rel (0) target = $region113
              $region112: #{tpu_custom_call.1} parent=97 // pred_region
                loop: start=0, step=1, limit=1
                $region114: #{tpu_custom_call.1} parent=112 // loop_pre_header
                  _
                $region115: #{tpu_custom_call.1} parent=112 // loop_header
                  %s478 = sphi 0, %s482
                  %p479 = scmp.ge.s32.totalorder %s478, 1
                  %s483 = sphi %s427, %s427
                  %s484 = sphi %s424, %s424
                $region116: #{tpu_custom_call.1} parent=112 // loop_header_branch
                  %481 = sbr.rel (%p479) target = $region120
                $region117: #{tpu_custom_call.1} parent=112 // loop_body
                  %v485 = vld [vmem:[%s483] sm:$0xff]
                  %486 = vst [vmem:[%s484] sm:$0xff] %v485
                  %v487 = vld [vmem:[%s483 + $0x8] sm:$0xff]
                  %488 = vst [vmem:[%s484 + $0x8] sm:$0xff] %v487
                  %v489 = vld [vmem:[%s483 + $0x10] sm:$0xff]
                  %490 = vst [vmem:[%s484 + $0x10] sm:$0xff] %v489
                  %v491 = vld [vmem:[%s483 + $0x18] sm:$0xff]
                  %492 = vst [vmem:[%s484 + $0x18] sm:$0xff] %v491
                  %v493 = vld [vmem:[%s483 + $0x40] sm:$0xff]
                  %494 = vst [vmem:[%s484 + $0x20] sm:$0xff] %v493
                  %v495 = vld [vmem:[%s483 + $0x48] sm:$0xff]
                  %496 = vst [vmem:[%s484 + $0x28] sm:$0xff] %v495
                  %v497 = vld [vmem:[%s483 + $0x50] sm:$0xff]
                  %498 = vst [vmem:[%s484 + $0x30] sm:$0xff] %v497
                  %v499 = vld [vmem:[%s483 + $0x58] sm:$0xff]
                  %500 = vst [vmem:[%s484 + $0x38] sm:$0xff] %v499
                  %v501 = vld [vmem:[%s483 + $0x80] sm:$0xff]
                  %502 = vst [vmem:[%s484 + $0x40] sm:$0xff] %v501
                  %v503 = vld [vmem:[%s483 + $0x88] sm:$0xff]
                  %504 = vst [vmem:[%s484 + $0x48] sm:$0xff] %v503
                  %v505 = vld [vmem:[%s483 + $0x90] sm:$0xff]
                  %506 = vst [vmem:[%s484 + $0x50] sm:$0xff] %v505
                  %v507 = vld [vmem:[%s483 + $0x98] sm:$0xff]
                  %508 = vst [vmem:[%s484 + $0x58] sm:$0xff] %v507
                  %v509 = vld [vmem:[%s483 + $0xc0] sm:$0xff]
                  %510 = vst [vmem:[%s484 + $0x60] sm:$0xff] %v509
                  %v511 = vld [vmem:[%s483 + $0xc8] sm:$0xff]
                  %512 = vst [vmem:[%s484 + $0x68] sm:$0xff] %v511
                  %v513 = vld [vmem:[%s483 + $0xd0] sm:$0xff]
                  %514 = vst [vmem:[%s484 + $0x70] sm:$0xff] %v513
                  %v515 = vld [vmem:[%s483 + $0xd8] sm:$0xff]
                  %516 = vst [vmem:[%s484 + $0x78] sm:$0xff] %v515
                $region118: #{tpu_custom_call.1} parent=112 // loop_footer
                  %s482 = sadd.s32 1, %s478
                $region119: #{tpu_custom_call.1} parent=112 // loop_footer_branch
                  %477 = sbr.rel target = $region115
                $region120: #{tpu_custom_call.1} parent=112 // loop_exit
                  _
              $region113: #{tpu_custom_call.1} parent=97 // pred_fallthru
                _
              // Predicated region
              $region121: #{tpu_custom_call.1} parent=97 // pred_check
                _
              $region122: #{tpu_custom_call.1} parent=97 // pred_check_branch
                %518 = sbr.rel target = $region124
              $region123: #{tpu_custom_call.1} parent=97 // pred_region
                _
              $region124: #{tpu_custom_call.1} parent=97 // pred_fallthru
                _
            $region98: #{tpu_custom_call.1} parent=93 // pred_fallthru
              _
            // Predicated region
            $region99: #{tpu_custom_call.1} parent=93 // pred_check
              _
            $region100: #{tpu_custom_call.1} parent=93 // pred_check_branch
              %433 = sbr.rel target = $region102
            $region101: #{tpu_custom_call.1} parent=93 // pred_region
              loop: start=0, step=1, limit=1
              $region103: #{tpu_custom_call.1} parent=101 // loop_pre_header
                _
              $region104: #{tpu_custom_call.1} parent=101 // loop_header
                %s436 = sphi 0, %s440
                %p437 = scmp.ge.s32.totalorder %s436, 1
                %s441 = sphi %s427, %s427
                %s442 = sphi %s424, %s424
              $region105: #{tpu_custom_call.1} parent=101 // loop_header_branch
                %439 = sbr.rel (%p437) target = $region109
              $region106: #{tpu_custom_call.1} parent=101 // loop_body
                %v443 = vld [vmem:[%s441] sm:$0xff]
                %444 = vst [vmem:[%s442] sm:$0xff] %v443
                %v445 = vld [vmem:[%s441 + $0x8] sm:$0xff]
                %446 = vst [vmem:[%s442 + $0x8] sm:$0xff] %v445
                %v447 = vld [vmem:[%s441 + $0x10] sm:$0xff]
                %448 = vst [vmem:[%s442 + $0x10] sm:$0xff] %v447
                %v449 = vld [vmem:[%s441 + $0x18] sm:$0xff]
                %450 = vst [vmem:[%s442 + $0x18] sm:$0xff] %v449
                %v451 = vld [vmem:[%s441 + $0x40] sm:$0xff]
                %452 = vst [vmem:[%s442 + $0x20] sm:$0xff] %v451
                %v453 = vld [vmem:[%s441 + $0x48] sm:$0xff]
                %454 = vst [vmem:[%s442 + $0x28] sm:$0xff] %v453
                %v455 = vld [vmem:[%s441 + $0x50] sm:$0xff]
                %456 = vst [vmem:[%s442 + $0x30] sm:$0xff] %v455
                %v457 = vld [vmem:[%s441 + $0x58] sm:$0xff]
                %458 = vst [vmem:[%s442 + $0x38] sm:$0xff] %v457
                %v459 = vld [vmem:[%s441 + $0x80] sm:$0xff]
                %460 = vst [vmem:[%s442 + $0x40] sm:$0xff] %v459
                %v461 = vld [vmem:[%s441 + $0x88] sm:$0xff]
                %462 = vst [vmem:[%s442 + $0x48] sm:$0xff] %v461
                %v463 = vld [vmem:[%s441 + $0x90] sm:$0xff]
                %464 = vst [vmem:[%s442 + $0x50] sm:$0xff] %v463
                %v465 = vld [vmem:[%s441 + $0x98] sm:$0xff]
                %466 = vst [vmem:[%s442 + $0x58] sm:$0xff] %v465
                %v467 = vld [vmem:[%s441 + $0xc0] sm:$0xff]
                %468 = vst [vmem:[%s442 + $0x60] sm:$0xff] %v467
                %v469 = vld [vmem:[%s441 + $0xc8] sm:$0xff]
                %470 = vst [vmem:[%s442 + $0x68] sm:$0xff] %v469
                %v471 = vld [vmem:[%s441 + $0xd0] sm:$0xff]
                %472 = vst [vmem:[%s442 + $0x70] sm:$0xff] %v471
                %v473 = vld [vmem:[%s441 + $0xd8] sm:$0xff]
                %474 = vst [vmem:[%s442 + $0x78] sm:$0xff] %v473
              $region107: #{tpu_custom_call.1} parent=101 // loop_footer
                %s440 = sadd.s32 1, %s436
              $region108: #{tpu_custom_call.1} parent=101 // loop_footer_branch
                %435 = sbr.rel target = $region104
              $region109: #{tpu_custom_call.1} parent=101 // loop_exit
                _
            $region102: #{tpu_custom_call.1} parent=93 // pred_fallthru
              _
          $region94: #{tpu_custom_call.1} parent=89 // pred_fallthru
            _
          %519 = vnop
        $region90: #{tpu_custom_call.1} parent=43 // pred_fallthru
          _
      $region44: #{tpu_custom_call.1} parent=5 // pred_fallthru
        _
      %p520 = scmp.le.s32.totalorder 1, %s16
      %p521 = scmp.lt.s32.totalorder %s16, 3
      %p522 = pnand %p520, %p521
      %p523 = pneg %p522
      // Predicated region
      $region125: #{tpu_custom_call.1} parent=5 // pred_check
        _
      $region126: #{tpu_custom_call.1} parent=5 // pred_check_branch
        %525 = sbr.rel (%p522) target = $region128
      $region127: #{tpu_custom_call.1} parent=5 // pred_region
        %s526 = ssub.s32 %s16, 1
        %s527 = sand.u32 %s55, 1
        %s528 = sand.u32 %s55, 1
        %s529 = smul.addr %s528, 128
        %s530 = scalar_lea.vmem [#allocation2], %s529
        // Predicated region
        $region129: #{tpu_custom_call.1} parent=127 // pred_check
          %p531 = pneg %p68
        $region130: #{tpu_custom_call.1} parent=127 // pred_check_branch
          %533 = sbr.rel (%p531) target = $region132
        $region131: #{tpu_custom_call.1} parent=127 // pred_region
          _
        $region132: #{tpu_custom_call.1} parent=127 // pred_fallthru
          _
        %s534 = sand.u32 %s81, 1
        %s535 = sand.u32 %s81, 1
        %s536 = smul.addr %s535, 128
        %s537 = scalar_lea.vmem [#allocation3], %s536
        // Predicated region
        $region133: #{tpu_custom_call.1} parent=127 // pred_check
          %p538 = pneg %p94
        $region134: #{tpu_custom_call.1} parent=127 // pred_check_branch
          %540 = sbr.rel (%p538) target = $region136
        $region135: #{tpu_custom_call.1} parent=127 // pred_region
          _
        $region136: #{tpu_custom_call.1} parent=127 // pred_fallthru
          _
        %s541 = smul.u32 4, %s21
        %p542 = scmp.lt.s32.totalorder %s541, 7
        %s543 = scalar_select %p542, %s541, 7
        %s544 = smul.addr %s543, 8
        %s545 = scalar_lea.vmem %s0, %s544
        %p546 = pneg %p42
        %p547 = pneg %p39
        %s548 = sand.u32 %s55, 1
        %s549 = sand.u32 %s55, 1
        %s550 = smul.addr %s549, 128
        %s551 = scalar_lea.vmem [#allocation2], %s550
        %p552 = pneg %p68
        %p553 = pneg %p65
        %s554 = sand.u32 %s81, 1
        %s555 = sand.u32 %s81, 1
        %s556 = smul.addr %s555, 128
        %s557 = scalar_lea.vmem [#allocation3], %s556
        %p558 = pneg %p94
        %p559 = pneg %p91
        %p560 = pneg %p115
        %p561 = pneg %p112
        %p562 = pneg %p136
        %p563 = pneg %p133
        %p564 = pneg %p157
        %p565 = pneg %p154
        %p566 = pneg %p178
        %p567 = pneg %p175
        %p568 = pneg %p199
        %p569 = pneg %p196
        %p570 = pneg %p220
        %p571 = pneg %p217
        %p572 = pneg %p241
        %p573 = pneg %p238
        %p574 = pneg %p267
        %p575 = pneg %p264
        %s576 = smul.u32 4, %s21
        %p577 = scmp.lt.s32.totalorder %s576, 7
        %s578 = scalar_select %p577, %s576, 7
        %s579 = smul.addr %s578, 8
        %s580 = scalar_lea.vmem %s10, %s579
        %s581 = smul.u32 4, %s21
        %p582 = scmp.lt.s32.totalorder %s581, 7
        %s583 = scalar_select %p582, %s581, 7
        %s584 = smul.addr %s583, 8
        %s585 = scalar_lea.vmem %s0, %s584
        %s586 = smul.u32 4, %s21
        %s587 = smul.u32 4, %s21
        %s588 = smul.u32 4, %s21
        %s589 = smul.u32 4, %s21
        %p590 = scmp.lt.s32.totalorder %s589, 7
        %s591 = scalar_select %p590, %s589, 7
        %s592 = smul.addr %s591, 8
        %s593 = scalar_lea.vmem %s10, %s592
        %s594 = smul.u32 4, %s21
        %v595 = vld [vmem:[%s8] sm:$0x1]
        %v596 = vld [vmem:[%s8 + $0x1] sm:$0x1]
        %v597 = vld [vmem:[%s8 + $0x2] sm:$0x1]
        %v598 = vld [vmem:[%s8 + $0x3] sm:$0x1]
        %v599 = vld [vmem:[%s8 + $0x4] sm:$0x1]
        %v600 = vld [vmem:[%s8 + $0x5] sm:$0x1]
        %v601 = vld [vmem:[%s8 + $0x6] sm:$0x1]
        %v602 = vld [vmem:[%s8 + $0x7] sm:$0x1]
        %v603 = vld [vmem:[%s9] sm:$0x1]
        %v604 = vld [vmem:[%s585] sm:$0xff]
        %v605 = vld [vmem:[%s585 + $0x8] sm:$0xff]
        %v606 = vld [vmem:[%s585 + $0x10] sm:$0xff]
        %v607 = vld [vmem:[%s585 + $0x18] sm:$0xff]
        %v608 = vld [vmem:[%s3] sm:$0xff]
        %v609 = vld [vmem:[%s3 + $0x8] sm:$0xff]
        %v610 = vld [vmem:[%s3 + $0x10] sm:$0xff]
        %v611 = vld [vmem:[%s3 + $0x18] sm:$0xff]
        %v612 = vlaneseq
        %v613 = vshrl.u32 %v612, 7
        %v614 = vsub.s32 0, %v613
        %v615 = vrot.slane %v595, %v614
        %vm616 = vcmask 261120
        %v618 = vsel %vm616, %v604, 0
        %v621 = vsel %vm616, %v605, 0
        %v624 = vsel %vm616, %v606, 0
        %v627 = vsel %vm616, %v607, 0
        %629 = vmatprep.subr.mxu0 0.0
        %630 = vmatpush1.msra.mxu0 %v608
        %631 = vmatprep.subr.mxu0 0.0
        %632 = vmatpush1.msra.mxu0 %v609
        %633 = vmatprep.subr.mxu0 0.0
        %634 = vmatpush1.msra.mxu0 %v610
        %635 = vmatprep.subr.mxu0 0.0
        %636 = vmatpush1.msra.mxu0 %v611
        %637 = vmatprep.subr.mxu0 0.0
        %638 = vmatpush1.msra.mxu0 0.0
        %639 = vmatprep.subr.mxu0 0.0
        %640 = vmatpush1.msra.mxu0 0.0
        %641 = vmatprep.subr.mxu0 0.0
        %642 = vmatpush1.msra.mxu0 0.0
        %643 = vmatprep.subr.mxu0 0.0
        %644 = vmatpush1.msra.mxu0 0.0
        %645 = vmatprep.subr.mxu0 0.0
        %646 = vmatpush1.msra.mxu0 0.0
        %647 = vmatprep.subr.mxu0 0.0
        %648 = vmatpush1.msra.mxu0 0.0
        %649 = vmatprep.subr.mxu0 0.0
        %650 = vmatpush1.msra.mxu0 0.0
        %651 = vmatprep.subr.mxu0 0.0
        %652 = vmatpush1.msra.mxu0 0.0
        %653 = vmatprep.subr.mxu0 0.0
        %654 = vmatpush1.msra.mxu0 0.0
        %655 = vmatprep.subr.mxu0 0.0
        %656 = vmatpush1.msra.mxu0 0.0
        %657 = vmatprep.subr.mxu0 0.0
        %658 = vmatpush1.msra.mxu0 0.0
        %659 = vmatprep.subr.mxu0 0.0
        %660 = vmatpush1.msra.mxu0 0.0
        %661 = vmatprep.subr.mxu0 0.0
        %662 = vmatpush1.msra.mxu0 0.0
        %663 = vmatprep.subr.mxu0 0.0
        %664 = vmatpush1.msra.mxu0 0.0
        %665 = vmatprep.subr.mxu0 0.0
        %666 = vmatpush1.msra.mxu0 0.0
        %667 = vmatprep.subr.mxu0 0.0
        %668 = vmatpush1.msra.mxu0 0.0
        %669 = vmatprep.subr.mxu0 0.0
        %670 = vmatpush1.msra.mxu0 0.0
        %671 = vmatprep.subr.mxu0 0.0
        %672 = vmatpush1.msra.mxu0 0.0
        %673 = vmatprep.subr.mxu0 0.0
        %674 = vmatpush1.msra.mxu0 0.0
        %675 = vmatprep.subr.mxu0 0.0
        %676 = vmatpush1.msra.mxu0 0.0
        %677 = vmatprep.subr.mxu0 0.0
        %678 = vmatpush1.msra.mxu0 0.0
        %679 = vmatprep.subr.mxu0 0.0
        %680 = vmatpush1.msra.mxu0 0.0
        %681 = vmatprep.subr.mxu0 0.0
        %682 = vmatpush1.msra.mxu0 0.0
        %683 = vmatprep.subr.mxu0 0.0
        %684 = vmatpush1.msra.mxu0 0.0
        %685 = vmatprep.subr.mxu0 0.0
        %686 = vmatpush1.msra.mxu0 0.0
        %687 = vmatprep.subr.mxu0 0.0
        %688 = vmatpush1.msra.mxu0 0.0
        %689 = vmatprep.subr.mxu0 0.0
        %690 = vmatpush1.msra.mxu0 0.0
        %691 = vmatprep.subr.mxu0 0.0
        %692 = vmatpush1.msra.mxu0 0.0
        %693 = vmatprep.mubr.f32.mxu0 0.0
        %694 = vmatmul.mubr.f32.gmra.mrb[0].mxu0 %v618
        %v695 = vpop.f32.mrb[0].mxu0
        %v696 = vadd.f32 %v615, %v695
        %v697 = vpop.f32.mrb[0].mxu0
        %698 = vmatprep.mubr.f32.mxu0 0.0
        %699 = vmatmul.mubr.f32.gmra.mrb[0].mxu0 %v621
        %v700 = vpop.f32.mrb[0].mxu0
        %v701 = vadd.f32 %v615, %v700
        %v702 = vpop.f32.mrb[0].mxu0
        %703 = vmatprep.mubr.f32.mxu0 0.0
        %704 = vmatmul.mubr.f32.gmra.mrb[0].mxu0 %v624
        %v705 = vpop.f32.mrb[0].mxu0
        %v706 = vadd.f32 %v615, %v705
        %v707 = vpop.f32.mrb[0].mxu0
        %708 = vmatprep.mubr.f32.mxu0 0.0
        %709 = vmatmul.mubr.f32.gmra.mrb[0].mxu0 %v627
        %v710 = vpop.f32.mrb[0].mxu0
        %v711 = vadd.f32 %v615, %v710
        %v712 = vpop.f32.mrb[0].mxu0
        %713 = vdwg.mxu0
        %v714 = vld [vmem:[%s530] sm:$0xff]
        %v715 = vld [vmem:[%s530 + $0x8] sm:$0xff]
        %v716 = vld [vmem:[%s530 + $0x10] sm:$0xff]
        %v717 = vld [vmem:[%s530 + $0x18] sm:$0xff]
        %v718 = vld [vmem:[%s530 + $0x20] sm:$0xff]
        %v719 = vld [vmem:[%s530 + $0x28] sm:$0xff]
        %v720 = vld [vmem:[%s530 + $0x30] sm:$0xff]
        %v721 = vld [vmem:[%s530 + $0x38] sm:$0xff]
        %v722 = vld [vmem:[%s530 + $0x40] sm:$0xff]
        %v723 = vld [vmem:[%s530 + $0x48] sm:$0xff]
        %v724 = vld [vmem:[%s530 + $0x50] sm:$0xff]
        %v725 = vld [vmem:[%s530 + $0x58] sm:$0xff]
        %v726 = vld [vmem:[%s530 + $0x60] sm:$0xff]
        %v727 = vld [vmem:[%s530 + $0x68] sm:$0xff]
        %v728 = vld [vmem:[%s530 + $0x70] sm:$0xff]
        %v729 = vld [vmem:[%s530 + $0x78] sm:$0xff]
        %v730 = vld [vmem:[%s537] sm:$0xff]
        %v731 = vld [vmem:[%s537 + $0x8] sm:$0xff]
        %v732 = vld [vmem:[%s537 + $0x10] sm:$0xff]
        %v733 = vld [vmem:[%s537 + $0x18] sm:$0xff]
        %v734 = vld [vmem:[%s537 + $0x20] sm:$0xff]
        %v735 = vld [vmem:[%s537 + $0x28] sm:$0xff]
        %v736 = vld [vmem:[%s537 + $0x30] sm:$0xff]
        %v737 = vld [vmem:[%s537 + $0x38] sm:$0xff]
        %v738 = vld [vmem:[%s537 + $0x40] sm:$0xff]
        %v739 = vld [vmem:[%s537 + $0x48] sm:$0xff]
        %v740 = vld [vmem:[%s537 + $0x50] sm:$0xff]
        %v741 = vld [vmem:[%s537 + $0x58] sm:$0xff]
        %v742 = vld [vmem:[%s537 + $0x60] sm:$0xff]
        %v743 = vld [vmem:[%s537 + $0x68] sm:$0xff]
        %v744 = vld [vmem:[%s537 + $0x70] sm:$0xff]
        %v745 = vld [vmem:[%s537 + $0x78] sm:$0xff]
        %v746 = vld [vmem:[%s5] sm:$0xf]
        %v748 = vlaneseq
        %v749 = vshrl.u32 %v748, 7
        %v750 = vsub.s32 0, %v749
        %v751 = vrot.slane %v603, %v750
        %vm753 = vcmask 31744
        %v755 = vsel %vm753, %v730, 0
        %v758 = vsel %vm753, %v731, 0
        %v761 = vsel %vm753, %v732, 0
        %v764 = vsel %vm753, %v733, 0
        %v767 = vsel %vm753, %v734, 0
        %v770 = vsel %vm753, %v735, 0
        %v773 = vsel %vm753, %v736, 0
        %v776 = vsel %vm753, %v737, 0
        %v779 = vsel %vm753, %v738, 0
        %v782 = vsel %vm753, %v739, 0
        %v785 = vsel %vm753, %v740, 0
        %v788 = vsel %vm753, %v741, 0
        %v791 = vsel %vm753, %v742, 0
        %v794 = vsel %vm753, %v743, 0
        %v797 = vsel %vm753, %v744, 0
        %v800 = vsel %vm753, %v745, 0
        %vm802 = vcmask 1043456
        %v804 = vsel %vm802, %v746, 0
        %806 = vmatprep.subr.mxu0 0.0
        %807 = vmatpush1.msra.mxu0 %v804
        %808 = vmatprep.subr.mxu0 0.0
        %809 = vmatpush1.msra.mxu0 0.0
        %810 = vmatprep.subr.mxu0 0.0
        %811 = vmatpush1.msra.mxu0 0.0
        %812 = vmatprep.subr.mxu0 0.0
        %813 = vmatpush1.msra.mxu0 0.0
        %814 = vmatprep.subr.mxu0 0.0
        %815 = vmatpush1.msra.mxu0 0.0
        %816 = vmatprep.subr.mxu0 0.0
        %817 = vmatpush1.msra.mxu0 0.0
        %818 = vmatprep.subr.mxu0 0.0
        %819 = vmatpush1.msra.mxu0 0.0
        %820 = vmatprep.subr.mxu0 0.0
        %821 = vmatpush1.msra.mxu0 0.0
        %822 = vmatprep.subr.mxu0 0.0
        %823 = vmatpush1.msra.mxu0 0.0
        %824 = vmatprep.subr.mxu0 0.0
        %825 = vmatpush1.msra.mxu0 0.0
        %826 = vmatprep.subr.mxu0 0.0
        %827 = vmatpush1.msra.mxu0 0.0
        %828 = vmatprep.subr.mxu0 0.0
        %829 = vmatpush1.msra.mxu0 0.0
        %830 = vmatprep.subr.mxu0 0.0
        %831 = vmatpush1.msra.mxu0 0.0
        %832 = vmatprep.subr.mxu0 0.0
        %833 = vmatpush1.msra.mxu0 0.0
        %834 = vmatprep.subr.mxu0 0.0
        %835 = vmatpush1.msra.mxu0 0.0
        %836 = vmatprep.subr.mxu0 0.0
        %837 = vmatpush1.msra.mxu0 0.0
        %838 = vmatprep.subr.mxu0 0.0
        %839 = vmatpush1.msra.mxu0 0.0
        %840 = vmatprep.subr.mxu0 0.0
        %841 = vmatpush1.msra.mxu0 0.0
        %842 = vmatprep.subr.mxu0 0.0
        %843 = vmatpush1.msra.mxu0 0.0
        %844 = vmatprep.subr.mxu0 0.0
        %845 = vmatpush1.msra.mxu0 0.0
        %846 = vmatprep.subr.mxu0 0.0
        %847 = vmatpush1.msra.mxu0 0.0
        %848 = vmatprep.subr.mxu0 0.0
        %849 = vmatpush1.msra.mxu0 0.0
        %850 = vmatprep.subr.mxu0 0.0
        %851 = vmatpush1.msra.mxu0 0.0
        %852 = vmatprep.subr.mxu0 0.0
        %853 = vmatpush1.msra.mxu0 0.0
        %854 = vmatprep.subr.mxu0 0.0
        %855 = vmatpush1.msra.mxu0 0.0
        %856 = vmatprep.subr.mxu0 0.0
        %857 = vmatpush1.msra.mxu0 0.0
        %858 = vmatprep.subr.mxu0 0.0
        %859 = vmatpush1.msra.mxu0 0.0
        %860 = vmatprep.subr.mxu0 0.0
        %861 = vmatpush1.msra.mxu0 0.0
        %862 = vmatprep.subr.mxu0 0.0
        %863 = vmatpush1.msra.mxu0 0.0
        %864 = vmatprep.subr.mxu0 0.0
        %865 = vmatpush1.msra.mxu0 0.0
        %866 = vmatprep.subr.mxu0 0.0
        %867 = vmatpush1.msra.mxu0 0.0
        %868 = vmatprep.subr.mxu0 0.0
        %869 = vmatpush1.msra.mxu0 0.0
        %870 = vmatprep.mubr.f32.mxu0 0.0
        %871 = vmatmul.mubr.f32.gmra.mrb[0].mxu0 %v755
        %v872 = vpop.f32.mrb[0].mxu0
        %v873 = vadd.f32 %v751, %v872
        %v874 = vpop.f32.mrb[0].mxu0
        %875 = vmatprep.mubr.f32.mxu0 0.0
        %876 = vmatmul.mubr.f32.gmra.mrb[0].mxu0 %v758
        %v877 = vpop.f32.mrb[0].mxu0
        %v878 = vadd.f32 %v751, %v877
        %v879 = vpop.f32.mrb[0].mxu0
        %880 = vmatprep.mubr.f32.mxu0 0.0
        %881 = vmatmul.mubr.f32.gmra.mrb[0].mxu0 %v761
        %v882 = vpop.f32.mrb[0].mxu0
        %v883 = vadd.f32 %v751, %v882
        %v884 = vpop.f32.mrb[0].mxu0
        %885 = vmatprep.mubr.f32.mxu0 0.0
        %886 = vmatmul.mubr.f32.gmra.mrb[0].mxu0 %v764
        %v887 = vpop.f32.mrb[0].mxu0
        %v888 = vadd.f32 %v751, %v887
        %v889 = vpop.f32.mrb[0].mxu0
        %890 = vmatprep.mubr.f32.mxu0 0.0
        %891 = vmatmul.mubr.f32.gmra.mrb[0].mxu0 %v767
        %v892 = vpop.f32.mrb[0].mxu0
        %v893 = vadd.f32 %v751, %v892
        %v894 = vpop.f32.mrb[0].mxu0
        %895 = vmatprep.mubr.f32.mxu0 0.0
        %896 = vmatmul.mubr.f32.gmra.mrb[0].mxu0 %v770
        %v897 = vpop.f32.mrb[0].mxu0
        %v898 = vadd.f32 %v751, %v897
        %v899 = vpop.f32.mrb[0].mxu0
        %900 = vmatprep.mubr.f32.mxu0 0.0
        %901 = vmatmul.mubr.f32.gmra.mrb[0].mxu0 %v773
        %v902 = vpop.f32.mrb[0].mxu0
        %v903 = vadd.f32 %v751, %v902
        %v904 = vpop.f32.mrb[0].mxu0
        %905 = vmatprep.mubr.f32.mxu0 0.0
        %906 = vmatmul.mubr.f32.gmra.mrb[0].mxu0 %v776
        %v907 = vpop.f32.mrb[0].mxu0
        %v908 = vadd.f32 %v751, %v907
        %v909 = vpop.f32.mrb[0].mxu0
        %910 = vmatprep.mubr.f32.mxu0 0.0
        %911 = vmatmul.mubr.f32.gmra.mrb[0].mxu0 %v779
        %v912 = vpop.f32.mrb[0].mxu0
        %v913 = vadd.f32 %v751, %v912
        %v914 = vpop.f32.mrb[0].mxu0
        %915 = vmatprep.mubr.f32.mxu0 0.0
        %916 = vmatmul.mubr.f32.gmra.mrb[0].mxu0 %v782
        %v917 = vpop.f32.mrb[0].mxu0
        %v918 = vadd.f32 %v751, %v917
        %v919 = vpop.f32.mrb[0].mxu0
        %920 = vmatprep.mubr.f32.mxu0 0.0
        %921 = vmatmul.mubr.f32.gmra.mrb[0].mxu0 %v785
        %v922 = vpop.f32.mrb[0].mxu0
        %v923 = vadd.f32 %v751, %v922
        %v924 = vpop.f32.mrb[0].mxu0
        %925 = vmatprep.mubr.f32.mxu0 0.0
        %926 = vmatmul.mubr.f32.gmra.mrb[0].mxu0 %v788
        %v927 = vpop.f32.mrb[0].mxu0
        %v928 = vadd.f32 %v751, %v927
        %v929 = vpop.f32.mrb[0].mxu0
        %930 = vmatprep.mubr.f32.mxu0 0.0
        %931 = vmatmul.mubr.f32.gmra.mrb[0].mxu0 %v791
        %v932 = vpop.f32.mrb[0].mxu0
        %v933 = vadd.f32 %v751, %v932
        %v934 = vpop.f32.mrb[0].mxu0
        %935 = vmatprep.mubr.f32.mxu0 0.0
        %936 = vmatmul.mubr.f32.gmra.mrb[0].mxu0 %v794
        %v937 = vpop.f32.mrb[0].mxu0
        %v938 = vadd.f32 %v751, %v937
        %v939 = vpop.f32.mrb[0].mxu0
        %940 = vmatprep.mubr.f32.mxu0 0.0
        %941 = vmatmul.mubr.f32.gmra.mrb[0].mxu0 %v797
        %v942 = vpop.f32.mrb[0].mxu0
        %v943 = vadd.f32 %v751, %v942
        %v944 = vpop.f32.mrb[0].mxu0
        %945 = vmatprep.mubr.f32.mxu0 0.0
        %946 = vmatmul.mubr.f32.gmra.mrb[0].mxu0 %v800
        %v947 = vpop.f32.mrb[0].mxu0
        %v948 = vadd.f32 %v751, %v947
        %v949 = vpop.f32.mrb[0].mxu0
        %950 = vdwg.mxu0
        %vm951 = vcmp.ge.f32.partialorder %v873, 0.0
        %vm952 = vcmp.ge.f32.partialorder %v878, 0.0
        %vm953 = vcmp.ge.f32.partialorder %v883, 0.0
        %vm954 = vcmp.ge.f32.partialorder %v888, 0.0
        %vm955 = vcmp.ge.f32.partialorder %v893, 0.0
        %vm956 = vcmp.ge.f32.partialorder %v898, 0.0
        %vm957 = vcmp.ge.f32.partialorder %v903, 0.0
        %vm958 = vcmp.ge.f32.partialorder %v908, 0.0
        %vm959 = vcmp.ge.f32.partialorder %v913, 0.0
        %vm960 = vcmp.ge.f32.partialorder %v918, 0.0
        %vm961 = vcmp.ge.f32.partialorder %v923, 0.0
        %vm962 = vcmp.ge.f32.partialorder %v928, 0.0
        %vm963 = vcmp.ge.f32.partialorder %v933, 0.0
        %vm964 = vcmp.ge.f32.partialorder %v938, 0.0
        %vm965 = vcmp.ge.f32.partialorder %v943, 0.0
        %vm966 = vcmp.ge.f32.partialorder %v948, 0.0
        %v967 = vmul.f32 %v873, 0.01
        %v968 = vmul.f32 %v878, 0.01
        %v969 = vmul.f32 %v883, 0.01
        %v970 = vmul.f32 %v888, 0.01
        %v971 = vmul.f32 %v893, 0.01
        %v972 = vmul.f32 %v898, 0.01
        %v973 = vmul.f32 %v903, 0.01
        %v974 = vmul.f32 %v908, 0.01
        %v975 = vmul.f32 %v913, 0.01
        %v976 = vmul.f32 %v918, 0.01
        %v977 = vmul.f32 %v923, 0.01
        %v978 = vmul.f32 %v928, 0.01
        %v979 = vmul.f32 %v933, 0.01
        %v980 = vmul.f32 %v938, 0.01
        %v981 = vmul.f32 %v943, 0.01
        %v982 = vmul.f32 %v948, 0.01
        %v983 = vsel %vm951, %v873, %v967
        %v984 = vsel %vm952, %v878, %v968
        %v985 = vsel %vm953, %v883, %v969
        %v986 = vsel %vm954, %v888, %v970
        %v987 = vsel %vm955, %v893, %v971
        %v988 = vsel %vm956, %v898, %v972
        %v989 = vsel %vm957, %v903, %v973
        %v990 = vsel %vm958, %v908, %v974
        %v991 = vsel %vm959, %v913, %v975
        %v992 = vsel %vm960, %v918, %v976
        %v993 = vsel %vm961, %v923, %v977
        %v994 = vsel %vm962, %v928, %v978
        %v995 = vsel %vm963, %v933, %v979
        %v996 = vsel %vm964, %v938, %v980
        %v997 = vsel %vm965, %v943, %v981
        %v998 = vsel %vm966, %v948, %v982
        %v999 = vld [vmem:[%s6] sm:$0xff]
        %v1000 = vld [vmem:[%s6 + $0x8] sm:$0xff]
        %v1001 = vld [vmem:[%s6 + $0x10] sm:$0xff]
        %v1002 = vld [vmem:[%s6 + $0x18] sm:$0xff]
        %v1003 = vld [vmem:[%s6 + $0x20] sm:$0xff]
        %v1004 = vld [vmem:[%s6 + $0x28] sm:$0xff]
        %v1005 = vld [vmem:[%s6 + $0x30] sm:$0xff]
        %v1006 = vld [vmem:[%s6 + $0x38] sm:$0xff]
        %v1007 = vlaneseq
        %v1008 = vshrl.u32 %v1007, 7
        %v1009 = vsub.s32 0, %v1008
        %v1010 = vrot.slane %v597, %v1009
        %vm1011 = vcmask 523264
        %v1013 = vsel %vm1011, %v983, 0
        %v1016 = vsel %vm1011, %v984, 0
        %v1019 = vsel %vm1011, %v985, 0
        %v1022 = vsel %vm1011, %v986, 0
        %v1025 = vsel %vm1011, %v987, 0
        %v1028 = vsel %vm1011, %v988, 0
        %v1031 = vsel %vm1011, %v989, 0
        %v1034 = vsel %vm1011, %v990, 0
        %v1037 = vsel %vm1011, %v991, 0
        %v1040 = vsel %vm1011, %v992, 0
        %v1043 = vsel %vm1011, %v993, 0
        %v1046 = vsel %vm1011, %v994, 0
        %v1049 = vsel %vm1011, %v995, 0
        %v1052 = vsel %vm1011, %v996, 0
        %v1055 = vsel %vm1011, %v997, 0
        %v1058 = vsel %vm1011, %v998, 0
        %1060 = vmatprep.subr.mxu0 0.0
        %1061 = vmatpush1.msra.mxu0 %v999
        %1062 = vmatprep.subr.mxu0 0.0
        %1063 = vmatpush1.msra.mxu0 %v1000
        %1064 = vmatprep.subr.mxu0 0.0
        %1065 = vmatpush1.msra.mxu0 %v1001
        %1066 = vmatprep.subr.mxu0 0.0
        %1067 = vmatpush1.msra.mxu0 %v1002
        %1068 = vmatprep.subr.mxu0 0.0
        %1069 = vmatpush1.msra.mxu0 %v1003
        %1070 = vmatprep.subr.mxu0 0.0
        %1071 = vmatpush1.msra.mxu0 %v1004
        %1072 = vmatprep.subr.mxu0 0.0
        %1073 = vmatpush1.msra.mxu0 %v1005
        %1074 = vmatprep.subr.mxu0 0.0
        %1075 = vmatpush1.msra.mxu0 %v1006
        %1076 = vmatprep.subr.mxu0 0.0
        %1077 = vmatpush1.msra.mxu0 0.0
        %1078 = vmatprep.subr.mxu0 0.0
        %1079 = vmatpush1.msra.mxu0 0.0
        %1080 = vmatprep.subr.mxu0 0.0
        %1081 = vmatpush1.msra.mxu0 0.0
        %1082 = vmatprep.subr.mxu0 0.0
        %1083 = vmatpush1.msra.mxu0 0.0
        %1084 = vmatprep.subr.mxu0 0.0
        %1085 = vmatpush1.msra.mxu0 0.0
        %1086 = vmatprep.subr.mxu0 0.0
        %1087 = vmatpush1.msra.mxu0 0.0
        %1088 = vmatprep.subr.mxu0 0.0
        %1089 = vmatpush1.msra.mxu0 0.0
        %1090 = vmatprep.subr.mxu0 0.0
        %1091 = vmatpush1.msra.mxu0 0.0
        %1092 = vmatprep.subr.mxu0 0.0
        %1093 = vmatpush1.msra.mxu0 0.0
        %1094 = vmatprep.subr.mxu0 0.0
        %1095 = vmatpush1.msra.mxu0 0.0
        %1096 = vmatprep.subr.mxu0 0.0
        %1097 = vmatpush1.msra.mxu0 0.0
        %1098 = vmatprep.subr.mxu0 0.0
        %1099 = vmatpush1.msra.mxu0 0.0
        %1100 = vmatprep.subr.mxu0 0.0
        %1101 = vmatpush1.msra.mxu0 0.0
        %1102 = vmatprep.subr.mxu0 0.0
        %1103 = vmatpush1.msra.mxu0 0.0
        %1104 = vmatprep.subr.mxu0 0.0
        %1105 = vmatpush1.msra.mxu0 0.0
        %1106 = vmatprep.subr.mxu0 0.0
        %1107 = vmatpush1.msra.mxu0 0.0
        %1108 = vmatprep.subr.mxu0 0.0
        %1109 = vmatpush1.msra.mxu0 0.0
        %1110 = vmatprep.subr.mxu0 0.0
        %1111 = vmatpush1.msra.mxu0 0.0
        %1112 = vmatprep.subr.mxu0 0.0
        %1113 = vmatpush1.msra.mxu0 0.0
        %1114 = vmatprep.subr.mxu0 0.0
        %1115 = vmatpush1.msra.mxu0 0.0
        %1116 = vmatprep.subr.mxu0 0.0
        %1117 = vmatpush1.msra.mxu0 0.0
        %1118 = vmatprep.subr.mxu0 0.0
        %1119 = vmatpush1.msra.mxu0 0.0
        %1120 = vmatprep.subr.mxu0 0.0
        %1121 = vmatpush1.msra.mxu0 0.0
        %1122 = vmatprep.subr.mxu0 0.0
        %1123 = vmatpush1.msra.mxu0 0.0
        %1124 = vmatprep.mubr.f32.mxu0 0.0
        %1125 = vmatmul.mubr.f32.gmra.mrb[0].mxu0 %v1013
        %v1126 = vpop.f32.mrb[0].mxu0
        %v1127 = vadd.f32 %v1010, %v1126
        %v1128 = vpop.f32.mrb[0].mxu0
        %1129 = vmatprep.mubr.f32.mxu0 0.0
        %1130 = vmatmul.mubr.f32.gmra.mrb[0].mxu0 %v1016
        %v1131 = vpop.f32.mrb[0].mxu0
        %v1132 = vadd.f32 %v1010, %v1131
        %v1133 = vpop.f32.mrb[0].mxu0
        %1134 = vmatprep.mubr.f32.mxu0 0.0
        %1135 = vmatmul.mubr.f32.gmra.mrb[0].mxu0 %v1019
        %v1136 = vpop.f32.mrb[0].mxu0
        %v1137 = vadd.f32 %v1010, %v1136
        %v1138 = vpop.f32.mrb[0].mxu0
        %1139 = vmatprep.mubr.f32.mxu0 0.0
        %1140 = vmatmul.mubr.f32.gmra.mrb[0].mxu0 %v1022
        %v1141 = vpop.f32.mrb[0].mxu0
        %v1142 = vadd.f32 %v1010, %v1141
        %v1143 = vpop.f32.mrb[0].mxu0
        %1144 = vmatprep.mubr.f32.mxu0 0.0
        %1145 = vmatmul.mubr.f32.gmra.mrb[0].mxu0 %v1025
        %v1146 = vpop.f32.mrb[0].mxu0
        %v1147 = vadd.f32 %v1010, %v1146
        %v1148 = vpop.f32.mrb[0].mxu0
        %1149 = vmatprep.mubr.f32.mxu0 0.0
        %1150 = vmatmul.mubr.f32.gmra.mrb[0].mxu0 %v1028
        %v1151 = vpop.f32.mrb[0].mxu0
        %v1152 = vadd.f32 %v1010, %v1151
        %v1153 = vpop.f32.mrb[0].mxu0
        %1154 = vmatprep.mubr.f32.mxu0 0.0
        %1155 = vmatmul.mubr.f32.gmra.mrb[0].mxu0 %v1031
        %v1156 = vpop.f32.mrb[0].mxu0
        %v1157 = vadd.f32 %v1010, %v1156
        %v1158 = vpop.f32.mrb[0].mxu0
        %1159 = vmatprep.mubr.f32.mxu0 0.0
        %1160 = vmatmul.mubr.f32.gmra.mrb[0].mxu0 %v1034
        %v1161 = vpop.f32.mrb[0].mxu0
        %v1162 = vadd.f32 %v1010, %v1161
        %v1163 = vpop.f32.mrb[0].mxu0
        %1164 = vmatprep.mubr.f32.mxu0 0.0
        %1165 = vmatmul.mubr.f32.gmra.mrb[0].mxu0 %v1037
        %v1166 = vpop.f32.mrb[0].mxu0
        %v1167 = vadd.f32 %v1010, %v1166
        %v1168 = vpop.f32.mrb[0].mxu0
        %1169 = vmatprep.mubr.f32.mxu0 0.0
        %1170 = vmatmul.mubr.f32.gmra.mrb[0].mxu0 %v1040
        %v1171 = vpop.f32.mrb[0].mxu0
        %v1172 = vadd.f32 %v1010, %v1171
        %v1173 = vpop.f32.mrb[0].mxu0
        %1174 = vmatprep.mubr.f32.mxu0 0.0
        %1175 = vmatmul.mubr.f32.gmra.mrb[0].mxu0 %v1043
        %v1176 = vpop.f32.mrb[0].mxu0
        %v1177 = vadd.f32 %v1010, %v1176
        %v1178 = vpop.f32.mrb[0].mxu0
        %1179 = vmatprep.mubr.f32.mxu0 0.0
        %1180 = vmatmul.mubr.f32.gmra.mrb[0].mxu0 %v1046
        %v1181 = vpop.f32.mrb[0].mxu0
        %v1182 = vadd.f32 %v1010, %v1181
        %v1183 = vpop.f32.mrb[0].mxu0
        %1184 = vmatprep.mubr.f32.mxu0 0.0
        %1185 = vmatmul.mubr.f32.gmra.mrb[0].mxu0 %v1049
        %v1186 = vpop.f32.mrb[0].mxu0
        %v1187 = vadd.f32 %v1010, %v1186
        %v1188 = vpop.f32.mrb[0].mxu0
        %1189 = vmatprep.mubr.f32.mxu0 0.0
        %1190 = vmatmul.mubr.f32.gmra.mrb[0].mxu0 %v1052
        %v1191 = vpop.f32.mrb[0].mxu0
        %v1192 = vadd.f32 %v1010, %v1191
        %v1193 = vpop.f32.mrb[0].mxu0
        %1194 = vmatprep.mubr.f32.mxu0 0.0
        %1195 = vmatmul.mubr.f32.gmra.mrb[0].mxu0 %v1055
        %v1196 = vpop.f32.mrb[0].mxu0
        %v1197 = vadd.f32 %v1010, %v1196
        %v1198 = vpop.f32.mrb[0].mxu0
        %1199 = vmatprep.mubr.f32.mxu0 0.0
        %1200 = vmatmul.mubr.f32.gmra.mrb[0].mxu0 %v1058
        %v1201 = vpop.f32.mrb[0].mxu0
        %v1202 = vadd.f32 %v1010, %v1201
        %v1203 = vpop.f32.mrb[0].mxu0
        %1204 = vdwg.mxu0
        %v1205 = vld [vmem:[%s4] sm:$0xff]
        %v1206 = vld [vmem:[%s4 + $0x8] sm:$0xff]
        %v1207 = vld [vmem:[%s4 + $0x10] sm:$0xff]
        %v1208 = vld [vmem:[%s4 + $0x18] sm:$0xff]
        %v1210 = vsel %vm616, %v714, 0
        %v1213 = vsel %vm616, %v715, 0
        %v1216 = vsel %vm616, %v716, 0
        %v1219 = vsel %vm616, %v717, 0
        %v1222 = vsel %vm616, %v718, 0
        %v1225 = vsel %vm616, %v719, 0
        %v1228 = vsel %vm616, %v720, 0
        %v1231 = vsel %vm616, %v721, 0
        %v1234 = vsel %vm616, %v722, 0
        %v1237 = vsel %vm616, %v723, 0
        %v1240 = vsel %vm616, %v724, 0
        %v1243 = vsel %vm616, %v725, 0
        %v1246 = vsel %vm616, %v726, 0
        %v1249 = vsel %vm616, %v727, 0
        %v1252 = vsel %vm616, %v728, 0
        %v1255 = vsel %vm616, %v729, 0
        %1257 = vmatprep.subr.mxu0 0.0
        %1258 = vmatpush1.msra.mxu0 %v1205
        %1259 = vmatprep.subr.mxu0 0.0
        %1260 = vmatpush1.msra.mxu0 %v1206
        %1261 = vmatprep.subr.mxu0 0.0
        %1262 = vmatpush1.msra.mxu0 %v1207
        %1263 = vmatprep.subr.mxu0 0.0
        %1264 = vmatpush1.msra.mxu0 %v1208
        %1265 = vmatprep.subr.mxu0 0.0
        %1266 = vmatpush1.msra.mxu0 0.0
        %1267 = vmatprep.subr.mxu0 0.0
        %1268 = vmatpush1.msra.mxu0 0.0
        %1269 = vmatprep.subr.mxu0 0.0
        %1270 = vmatpush1.msra.mxu0 0.0
        %1271 = vmatprep.subr.mxu0 0.0
        %1272 = vmatpush1.msra.mxu0 0.0
        %1273 = vmatprep.subr.mxu0 0.0
        %1274 = vmatpush1.msra.mxu0 0.0
        %1275 = vmatprep.subr.mxu0 0.0
        %1276 = vmatpush1.msra.mxu0 0.0
        %1277 = vmatprep.subr.mxu0 0.0
        %1278 = vmatpush1.msra.mxu0 0.0
        %1279 = vmatprep.subr.mxu0 0.0
        %1280 = vmatpush1.msra.mxu0 0.0
        %1281 = vmatprep.subr.mxu0 0.0
        %1282 = vmatpush1.msra.mxu0 0.0
        %1283 = vmatprep.subr.mxu0 0.0
        %1284 = vmatpush1.msra.mxu0 0.0
        %1285 = vmatprep.subr.mxu0 0.0
        %1286 = vmatpush1.msra.mxu0 0.0
        %1287 = vmatprep.subr.mxu0 0.0
        %1288 = vmatpush1.msra.mxu0 0.0
        %1289 = vmatprep.subr.mxu0 0.0
        %1290 = vmatpush1.msra.mxu0 0.0
        %1291 = vmatprep.subr.mxu0 0.0
        %1292 = vmatpush1.msra.mxu0 0.0
        %1293 = vmatprep.subr.mxu0 0.0
        %1294 = vmatpush1.msra.mxu0 0.0
        %1295 = vmatprep.subr.mxu0 0.0
        %1296 = vmatpush1.msra.mxu0 0.0
        %1297 = vmatprep.subr.mxu0 0.0
        %1298 = vmatpush1.msra.mxu0 0.0
        %1299 = vmatprep.subr.mxu0 0.0
        %1300 = vmatpush1.msra.mxu0 0.0
        %1301 = vmatprep.subr.mxu0 0.0
        %1302 = vmatpush1.msra.mxu0 0.0
        %1303 = vmatprep.subr.mxu0 0.0
        %1304 = vmatpush1.msra.mxu0 0.0
        %1305 = vmatprep.subr.mxu0 0.0
        %1306 = vmatpush1.msra.mxu0 0.0
        %1307 = vmatprep.subr.mxu0 0.0
        %1308 = vmatpush1.msra.mxu0 0.0
        %1309 = vmatprep.subr.mxu0 0.0
        %1310 = vmatpush1.msra.mxu0 0.0
        %1311 = vmatprep.subr.mxu0 0.0
        %1312 = vmatpush1.msra.mxu0 0.0
        %1313 = vmatprep.subr.mxu0 0.0
        %1314 = vmatpush1.msra.mxu0 0.0
        %1315 = vmatprep.subr.mxu0 0.0
        %1316 = vmatpush1.msra.mxu0 0.0
        %1317 = vmatprep.subr.mxu0 0.0
        %1318 = vmatpush1.msra.mxu0 0.0
        %1319 = vmatprep.subr.mxu0 0.0
        %1320 = vmatpush1.msra.mxu0 0.0
        %1321 = vmatprep.mubr.f32.mxu0 0.0
        %1322 = vmatmul.mubr.f32.gmra.mrb[0].mxu0 %v1210
        %v1323 = vpop.f32.mrb[0].mxu0
        %v1324 = vadd.f32 0.0, %v1323
        %v1325 = vpop.f32.mrb[0].mxu0
        %1326 = vmatprep.mubr.f32.mxu0 0.0
        %1327 = vmatmul.mubr.f32.gmra.mrb[0].mxu0 %v1213
        %v1328 = vpop.f32.mrb[0].mxu0
        %v1329 = vadd.f32 0.0, %v1328
        %v1330 = vpop.f32.mrb[0].mxu0
        %1331 = vmatprep.mubr.f32.mxu0 0.0
        %1332 = vmatmul.mubr.f32.gmra.mrb[0].mxu0 %v1216
        %v1333 = vpop.f32.mrb[0].mxu0
        %v1334 = vadd.f32 0.0, %v1333
        %v1335 = vpop.f32.mrb[0].mxu0
        %1336 = vmatprep.mubr.f32.mxu0 0.0
        %1337 = vmatmul.mubr.f32.gmra.mrb[0].mxu0 %v1219
        %v1338 = vpop.f32.mrb[0].mxu0
        %v1339 = vadd.f32 0.0, %v1338
        %v1340 = vpop.f32.mrb[0].mxu0
        %1341 = vmatprep.mubr.f32.mxu0 0.0
        %1342 = vmatmul.mubr.f32.gmra.mrb[0].mxu0 %v1222
        %v1343 = vpop.f32.mrb[0].mxu0
        %v1344 = vadd.f32 0.0, %v1343
        %v1345 = vpop.f32.mrb[0].mxu0
        %1346 = vmatprep.mubr.f32.mxu0 0.0
        %1347 = vmatmul.mubr.f32.gmra.mrb[0].mxu0 %v1225
        %v1348 = vpop.f32.mrb[0].mxu0
        %v1349 = vadd.f32 0.0, %v1348
        %v1350 = vpop.f32.mrb[0].mxu0
        %1351 = vmatprep.mubr.f32.mxu0 0.0
        %1352 = vmatmul.mubr.f32.gmra.mrb[0].mxu0 %v1228
        %v1353 = vpop.f32.mrb[0].mxu0
        %v1354 = vadd.f32 0.0, %v1353
        %v1355 = vpop.f32.mrb[0].mxu0
        %1356 = vmatprep.mubr.f32.mxu0 0.0
        %1357 = vmatmul.mubr.f32.gmra.mrb[0].mxu0 %v1231
        %v1358 = vpop.f32.mrb[0].mxu0
        %v1359 = vadd.f32 0.0, %v1358
        %v1360 = vpop.f32.mrb[0].mxu0
        %1361 = vmatprep.mubr.f32.mxu0 0.0
        %1362 = vmatmul.mubr.f32.gmra.mrb[0].mxu0 %v1234
        %v1363 = vpop.f32.mrb[0].mxu0
        %v1364 = vadd.f32 0.0, %v1363
        %v1365 = vpop.f32.mrb[0].mxu0
        %1366 = vmatprep.mubr.f32.mxu0 0.0
        %1367 = vmatmul.mubr.f32.gmra.mrb[0].mxu0 %v1237
        %v1368 = vpop.f32.mrb[0].mxu0
        %v1369 = vadd.f32 0.0, %v1368
        %v1370 = vpop.f32.mrb[0].mxu0
        %1371 = vmatprep.mubr.f32.mxu0 0.0
        %1372 = vmatmul.mubr.f32.gmra.mrb[0].mxu0 %v1240
        %v1373 = vpop.f32.mrb[0].mxu0
        %v1374 = vadd.f32 0.0, %v1373
        %v1375 = vpop.f32.mrb[0].mxu0
        %1376 = vmatprep.mubr.f32.mxu0 0.0
        %1377 = vmatmul.mubr.f32.gmra.mrb[0].mxu0 %v1243
        %v1378 = vpop.f32.mrb[0].mxu0
        %v1379 = vadd.f32 0.0, %v1378
        %v1380 = vpop.f32.mrb[0].mxu0
        %1381 = vmatprep.mubr.f32.mxu0 0.0
        %1382 = vmatmul.mubr.f32.gmra.mrb[0].mxu0 %v1246
        %v1383 = vpop.f32.mrb[0].mxu0
        %v1384 = vadd.f32 0.0, %v1383
        %v1385 = vpop.f32.mrb[0].mxu0
        %1386 = vmatprep.mubr.f32.mxu0 0.0
        %1387 = vmatmul.mubr.f32.gmra.mrb[0].mxu0 %v1249
        %v1388 = vpop.f32.mrb[0].mxu0
        %v1389 = vadd.f32 0.0, %v1388
        %v1390 = vpop.f32.mrb[0].mxu0
        %1391 = vmatprep.mubr.f32.mxu0 0.0
        %1392 = vmatmul.mubr.f32.gmra.mrb[0].mxu0 %v1252
        %v1393 = vpop.f32.mrb[0].mxu0
        %v1394 = vadd.f32 0.0, %v1393
        %v1395 = vpop.f32.mrb[0].mxu0
        %1396 = vmatprep.mubr.f32.mxu0 0.0
        %1397 = vmatmul.mubr.f32.gmra.mrb[0].mxu0 %v1255
        %v1398 = vpop.f32.mrb[0].mxu0
        %v1399 = vadd.f32 0.0, %v1398
        %v1400 = vpop.f32.mrb[0].mxu0
        %1401 = vdwg.mxu0
        %v1402 = vlaneseq
        %v1403 = vshrl.u32 %v1402, 7
        %v1404 = vsub.s32 0, %v1403
        %v1405 = vrot.slane %v596, %v1404
        %1407 = vrot.lane.b32.xlu0 %v1405, 32
        %v1408 = vpop.permute.xlu0 %1407
        %v1410 = vadd.f32 %v1324, %v1408
        %v1411 = vadd.f32 %v1329, %v1408
        %v1412 = vadd.f32 %v1334, %v1408
        %v1413 = vadd.f32 %v1339, %v1408
        %v1414 = vadd.f32 %v1344, %v1408
        %v1415 = vadd.f32 %v1349, %v1408
        %v1416 = vadd.f32 %v1354, %v1408
        %v1417 = vadd.f32 %v1359, %v1408
        %v1418 = vadd.f32 %v1364, %v1408
        %v1419 = vadd.f32 %v1369, %v1408
        %v1420 = vadd.f32 %v1374, %v1408
        %v1421 = vadd.f32 %v1379, %v1408
        %v1422 = vadd.f32 %v1384, %v1408
        %v1423 = vadd.f32 %v1389, %v1408
        %v1424 = vadd.f32 %v1394, %v1408
        %v1425 = vadd.f32 %v1399, %v1408
        %1442 = vrot.lane.b32.xlu0 %v1127, 32
        %v1443 = vpop.permute.xlu0 %1442
        %1444 = vrot.lane.b32.xlu0 %v1132, 32
        %v1445 = vpop.permute.xlu0 %1444
        %1446 = vrot.lane.b32.xlu0 %v1137, 32
        %v1447 = vpop.permute.xlu0 %1446
        %1448 = vrot.lane.b32.xlu0 %v1142, 32
        %v1449 = vpop.permute.xlu0 %1448
        %1450 = vrot.lane.b32.xlu0 %v1147, 32
        %v1451 = vpop.permute.xlu0 %1450
        %1452 = vrot.lane.b32.xlu0 %v1152, 32
        %v1453 = vpop.permute.xlu0 %1452
        %1454 = vrot.lane.b32.xlu0 %v1157, 32
        %v1455 = vpop.permute.xlu0 %1454
        %1456 = vrot.lane.b32.xlu0 %v1162, 32
        %v1457 = vpop.permute.xlu0 %1456
        %1458 = vrot.lane.b32.xlu0 %v1167, 32
        %v1459 = vpop.permute.xlu0 %1458
        %1460 = vrot.lane.b32.xlu0 %v1172, 32
        %v1461 = vpop.permute.xlu0 %1460
        %1462 = vrot.lane.b32.xlu0 %v1177, 32
        %v1463 = vpop.permute.xlu0 %1462
        %1464 = vrot.lane.b32.xlu0 %v1182, 32
        %v1465 = vpop.permute.xlu0 %1464
        %1466 = vrot.lane.b32.xlu0 %v1187, 32
        %v1467 = vpop.permute.xlu0 %1466
        %1468 = vrot.lane.b32.xlu0 %v1192, 32
        %v1469 = vpop.permute.xlu0 %1468
        %1470 = vrot.lane.b32.xlu0 %v1197, 32
        %v1471 = vpop.permute.xlu0 %1470
        %1472 = vrot.lane.b32.xlu0 %v1202, 32
        %v1473 = vpop.permute.xlu0 %1472
        %v1490 = vadd.f32 %v1410, %v1443
        %v1491 = vadd.f32 %v1411, %v1445
        %v1492 = vadd.f32 %v1412, %v1447
        %v1493 = vadd.f32 %v1413, %v1449
        %v1494 = vadd.f32 %v1414, %v1451
        %v1495 = vadd.f32 %v1415, %v1453
        %v1496 = vadd.f32 %v1416, %v1455
        %v1497 = vadd.f32 %v1417, %v1457
        %v1498 = vadd.f32 %v1418, %v1459
        %v1499 = vadd.f32 %v1419, %v1461
        %v1500 = vadd.f32 %v1420, %v1463
        %v1501 = vadd.f32 %v1421, %v1465
        %v1502 = vadd.f32 %v1422, %v1467
        %v1503 = vadd.f32 %v1423, %v1469
        %v1504 = vadd.f32 %v1424, %v1471
        %v1505 = vadd.f32 %v1425, %v1473
        %v1506 = vadd.f32 %v1324, %v1127
        %v1507 = vadd.f32 %v1329, %v1132
        %v1508 = vadd.f32 %v1334, %v1137
        %v1509 = vadd.f32 %v1339, %v1142
        %v1510 = vadd.f32 %v1344, %v1147
        %v1511 = vadd.f32 %v1349, %v1152
        %v1512 = vadd.f32 %v1354, %v1157
        %v1513 = vadd.f32 %v1359, %v1162
        %v1514 = vadd.f32 %v1364, %v1167
        %v1515 = vadd.f32 %v1369, %v1172
        %v1516 = vadd.f32 %v1374, %v1177
        %v1517 = vadd.f32 %v1379, %v1182
        %v1518 = vadd.f32 %v1384, %v1187
        %v1519 = vadd.f32 %v1389, %v1192
        %v1520 = vadd.f32 %v1394, %v1197
        %v1521 = vadd.f32 %v1399, %v1202
        %v1522 = vadd.f32 %v1506, %v696
        %v1523 = vadd.f32 %v1507, %v701
        %v1524 = vadd.f32 %v1508, %v706
        %v1525 = vadd.f32 %v1509, %v711
        %v1526 = vadd.f32 %v1510, %v696
        %v1527 = vadd.f32 %v1511, %v701
        %v1528 = vadd.f32 %v1512, %v706
        %v1529 = vadd.f32 %v1513, %v711
        %v1530 = vadd.f32 %v1514, %v696
        %v1531 = vadd.f32 %v1515, %v701
        %v1532 = vadd.f32 %v1516, %v706
        %v1533 = vadd.f32 %v1517, %v711
        %v1534 = vadd.f32 %v1518, %v696
        %v1535 = vadd.f32 %v1519, %v701
        %v1536 = vadd.f32 %v1520, %v706
        %v1537 = vadd.f32 %v1521, %v711
        %v1538 = vlaneseq
        %v1539 = vshrl.u32 %v1538, 7
        %v1540 = vsub.s32 0, %v1539
        %v1541 = vrot.slane %v598, %v1540
        %v1542 = vmul.f32 %v1522, %v1541
        %v1543 = vmul.f32 %v1523, %v1541
        %v1544 = vmul.f32 %v1524, %v1541
        %v1545 = vmul.f32 %v1525, %v1541
        %v1546 = vmul.f32 %v1526, %v1541
        %v1547 = vmul.f32 %v1527, %v1541
        %v1548 = vmul.f32 %v1528, %v1541
        %v1549 = vmul.f32 %v1529, %v1541
        %v1550 = vmul.f32 %v1530, %v1541
        %v1551 = vmul.f32 %v1531, %v1541
        %v1552 = vmul.f32 %v1532, %v1541
        %v1553 = vmul.f32 %v1533, %v1541
        %v1554 = vmul.f32 %v1534, %v1541
        %v1555 = vmul.f32 %v1535, %v1541
        %v1556 = vmul.f32 %v1536, %v1541
        %v1557 = vmul.f32 %v1537, %v1541
        %v1558 = vlaneseq
        %v1559 = vshrl.u32 %v1558, 7
        %v1560 = vsub.s32 0, %v1559
        %v1561 = vrot.slane %v599, %v1560
        %v1562 = vadd.f32 %v1542, %v1561
        %v1563 = vadd.f32 %v1543, %v1561
        %v1564 = vadd.f32 %v1544, %v1561
        %v1565 = vadd.f32 %v1545, %v1561
        %v1566 = vadd.f32 %v1546, %v1561
        %v1567 = vadd.f32 %v1547, %v1561
        %v1568 = vadd.f32 %v1548, %v1561
        %v1569 = vadd.f32 %v1549, %v1561
        %v1570 = vadd.f32 %v1550, %v1561
        %v1571 = vadd.f32 %v1551, %v1561
        %v1572 = vadd.f32 %v1552, %v1561
        %v1573 = vadd.f32 %v1553, %v1561
        %v1574 = vadd.f32 %v1554, %v1561
        %v1575 = vadd.f32 %v1555, %v1561
        %v1576 = vadd.f32 %v1556, %v1561
        %v1577 = vadd.f32 %v1557, %v1561
        %vm1578 = vcmp.ge.f32.partialorder %v1562, 0.0
        %vm1579 = vcmp.ge.f32.partialorder %v1563, 0.0
        %vm1580 = vcmp.ge.f32.partialorder %v1564, 0.0
        %vm1581 = vcmp.ge.f32.partialorder %v1565, 0.0
        %vm1582 = vcmp.ge.f32.partialorder %v1566, 0.0
        %vm1583 = vcmp.ge.f32.partialorder %v1567, 0.0
        %vm1584 = vcmp.ge.f32.partialorder %v1568, 0.0
        %vm1585 = vcmp.ge.f32.partialorder %v1569, 0.0
        %vm1586 = vcmp.ge.f32.partialorder %v1570, 0.0
        %vm1587 = vcmp.ge.f32.partialorder %v1571, 0.0
        %vm1588 = vcmp.ge.f32.partialorder %v1572, 0.0
        %vm1589 = vcmp.ge.f32.partialorder %v1573, 0.0
        %vm1590 = vcmp.ge.f32.partialorder %v1574, 0.0
        %vm1591 = vcmp.ge.f32.partialorder %v1575, 0.0
        %vm1592 = vcmp.ge.f32.partialorder %v1576, 0.0
        %vm1593 = vcmp.ge.f32.partialorder %v1577, 0.0
        %v1594 = vmul.f32 %v1562, 0.01
        %v1595 = vmul.f32 %v1563, 0.01
        %v1596 = vmul.f32 %v1564, 0.01
        %v1597 = vmul.f32 %v1565, 0.01
        %v1598 = vmul.f32 %v1566, 0.01
        %v1599 = vmul.f32 %v1567, 0.01
        %v1600 = vmul.f32 %v1568, 0.01
        %v1601 = vmul.f32 %v1569, 0.01
        %v1602 = vmul.f32 %v1570, 0.01
        %v1603 = vmul.f32 %v1571, 0.01
        %v1604 = vmul.f32 %v1572, 0.01
        %v1605 = vmul.f32 %v1573, 0.01
        %v1606 = vmul.f32 %v1574, 0.01
        %v1607 = vmul.f32 %v1575, 0.01
        %v1608 = vmul.f32 %v1576, 0.01
        %v1609 = vmul.f32 %v1577, 0.01
        %v1610 = vsel %vm1578, %v1562, %v1594
        %v1611 = vsel %vm1579, %v1563, %v1595
        %v1612 = vsel %vm1580, %v1564, %v1596
        %v1613 = vsel %vm1581, %v1565, %v1597
        %v1614 = vsel %vm1582, %v1566, %v1598
        %v1615 = vsel %vm1583, %v1567, %v1599
        %v1616 = vsel %vm1584, %v1568, %v1600
        %v1617 = vsel %vm1585, %v1569, %v1601
        %v1618 = vsel %vm1586, %v1570, %v1602
        %v1619 = vsel %vm1587, %v1571, %v1603
        %v1620 = vsel %vm1588, %v1572, %v1604
        %v1621 = vsel %vm1589, %v1573, %v1605
        %v1622 = vsel %vm1590, %v1574, %v1606
        %v1623 = vsel %vm1591, %v1575, %v1607
        %v1624 = vsel %vm1592, %v1576, %v1608
        %v1625 = vsel %vm1593, %v1577, %v1609
        %v1626 = vld [vmem:[%s7] sm:$0xff]
        %v1627 = vld [vmem:[%s7 + $0x8] sm:$0xff]
        %v1628 = vld [vmem:[%s7 + $0x10] sm:$0xff]
        %v1629 = vld [vmem:[%s7 + $0x18] sm:$0xff]
        %v1630 = vlaneseq
        %v1631 = vshrl.u32 %v1630, 7
        %v1632 = vsub.s32 0, %v1631
        %v1633 = vrot.slane %v600, %v1632
        %v1635 = vsel %vm616, %v1610, 0
        %v1638 = vsel %vm616, %v1611, 0
        %v1641 = vsel %vm616, %v1612, 0
        %v1644 = vsel %vm616, %v1613, 0
        %v1647 = vsel %vm616, %v1614, 0
        %v1650 = vsel %vm616, %v1615, 0
        %v1653 = vsel %vm616, %v1616, 0
        %v1656 = vsel %vm616, %v1617, 0
        %v1659 = vsel %vm616, %v1618, 0
        %v1662 = vsel %vm616, %v1619, 0
        %v1665 = vsel %vm616, %v1620, 0
        %v1668 = vsel %vm616, %v1621, 0
        %v1671 = vsel %vm616, %v1622, 0
        %v1674 = vsel %vm616, %v1623, 0
        %v1677 = vsel %vm616, %v1624, 0
        %v1680 = vsel %vm616, %v1625, 0
        %1682 = vmatprep.subr.mxu0 0.0
        %1683 = vmatpush1.msra.mxu0 %v1626
        %1684 = vmatprep.subr.mxu0 0.0
        %1685 = vmatpush1.msra.mxu0 %v1627
        %1686 = vmatprep.subr.mxu0 0.0
        %1687 = vmatpush1.msra.mxu0 %v1628
        %1688 = vmatprep.subr.mxu0 0.0
        %1689 = vmatpush1.msra.mxu0 %v1629
        %1690 = vmatprep.subr.mxu0 0.0
        %1691 = vmatpush1.msra.mxu0 0.0
        %1692 = vmatprep.subr.mxu0 0.0
        %1693 = vmatpush1.msra.mxu0 0.0
        %1694 = vmatprep.subr.mxu0 0.0
        %1695 = vmatpush1.msra.mxu0 0.0
        %1696 = vmatprep.subr.mxu0 0.0
        %1697 = vmatpush1.msra.mxu0 0.0
        %1698 = vmatprep.subr.mxu0 0.0
        %1699 = vmatpush1.msra.mxu0 0.0
        %1700 = vmatprep.subr.mxu0 0.0
        %1701 = vmatpush1.msra.mxu0 0.0
        %1702 = vmatprep.subr.mxu0 0.0
        %1703 = vmatpush1.msra.mxu0 0.0
        %1704 = vmatprep.subr.mxu0 0.0
        %1705 = vmatpush1.msra.mxu0 0.0
        %1706 = vmatprep.subr.mxu0 0.0
        %1707 = vmatpush1.msra.mxu0 0.0
        %1708 = vmatprep.subr.mxu0 0.0
        %1709 = vmatpush1.msra.mxu0 0.0
        %1710 = vmatprep.subr.mxu0 0.0
        %1711 = vmatpush1.msra.mxu0 0.0
        %1712 = vmatprep.subr.mxu0 0.0
        %1713 = vmatpush1.msra.mxu0 0.0
        %1714 = vmatprep.subr.mxu0 0.0
        %1715 = vmatpush1.msra.mxu0 0.0
        %1716 = vmatprep.subr.mxu0 0.0
        %1717 = vmatpush1.msra.mxu0 0.0
        %1718 = vmatprep.subr.mxu0 0.0
        %1719 = vmatpush1.msra.mxu0 0.0
        %1720 = vmatprep.subr.mxu0 0.0
        %1721 = vmatpush1.msra.mxu0 0.0
        %1722 = vmatprep.subr.mxu0 0.0
        %1723 = vmatpush1.msra.mxu0 0.0
        %1724 = vmatprep.subr.mxu0 0.0
        %1725 = vmatpush1.msra.mxu0 0.0
        %1726 = vmatprep.subr.mxu0 0.0
        %1727 = vmatpush1.msra.mxu0 0.0
        %1728 = vmatprep.subr.mxu0 0.0
        %1729 = vmatpush1.msra.mxu0 0.0
        %1730 = vmatprep.subr.mxu0 0.0
        %1731 = vmatpush1.msra.mxu0 0.0
        %1732 = vmatprep.subr.mxu0 0.0
        %1733 = vmatpush1.msra.mxu0 0.0
        %1734 = vmatprep.subr.mxu0 0.0
        %1735 = vmatpush1.msra.mxu0 0.0
        %1736 = vmatprep.subr.mxu0 0.0
        %1737 = vmatpush1.msra.mxu0 0.0
        %1738 = vmatprep.subr.mxu0 0.0
        %1739 = vmatpush1.msra.mxu0 0.0
        %1740 = vmatprep.subr.mxu0 0.0
        %1741 = vmatpush1.msra.mxu0 0.0
        %1742 = vmatprep.subr.mxu0 0.0
        %1743 = vmatpush1.msra.mxu0 0.0
        %1744 = vmatprep.subr.mxu0 0.0
        %1745 = vmatpush1.msra.mxu0 0.0
        %1746 = vmatprep.mubr.f32.mxu0 0.0
        %1747 = vmatmul.mubr.f32.gmra.mrb[0].mxu0 %v1635
        %v1748 = vpop.f32.mrb[0].mxu0
        %v1749 = vadd.f32 %v1633, %v1748
        %v1750 = vpop.f32.mrb[0].mxu0
        %1751 = vmatprep.mubr.f32.mxu0 0.0
        %1752 = vmatmul.mubr.f32.gmra.mrb[0].mxu0 %v1638
        %v1753 = vpop.f32.mrb[0].mxu0
        %v1754 = vadd.f32 %v1633, %v1753
        %v1755 = vpop.f32.mrb[0].mxu0
        %1756 = vmatprep.mubr.f32.mxu0 0.0
        %1757 = vmatmul.mubr.f32.gmra.mrb[0].mxu0 %v1641
        %v1758 = vpop.f32.mrb[0].mxu0
        %v1759 = vadd.f32 %v1633, %v1758
        %v1760 = vpop.f32.mrb[0].mxu0
        %1761 = vmatprep.mubr.f32.mxu0 0.0
        %1762 = vmatmul.mubr.f32.gmra.mrb[0].mxu0 %v1644
        %v1763 = vpop.f32.mrb[0].mxu0
        %v1764 = vadd.f32 %v1633, %v1763
        %v1765 = vpop.f32.mrb[0].mxu0
        %1766 = vmatprep.mubr.f32.mxu0 0.0
        %1767 = vmatmul.mubr.f32.gmra.mrb[0].mxu0 %v1647
        %v1768 = vpop.f32.mrb[0].mxu0
        %v1769 = vadd.f32 %v1633, %v1768
        %v1770 = vpop.f32.mrb[0].mxu0
        %1771 = vmatprep.mubr.f32.mxu0 0.0
        %1772 = vmatmul.mubr.f32.gmra.mrb[0].mxu0 %v1650
        %v1773 = vpop.f32.mrb[0].mxu0
        %v1774 = vadd.f32 %v1633, %v1773
        %v1775 = vpop.f32.mrb[0].mxu0
        %1776 = vmatprep.mubr.f32.mxu0 0.0
        %1777 = vmatmul.mubr.f32.gmra.mrb[0].mxu0 %v1653
        %v1778 = vpop.f32.mrb[0].mxu0
        %v1779 = vadd.f32 %v1633, %v1778
        %v1780 = vpop.f32.mrb[0].mxu0
        %1781 = vmatprep.mubr.f32.mxu0 0.0
        %1782 = vmatmul.mubr.f32.gmra.mrb[0].mxu0 %v1656
        %v1783 = vpop.f32.mrb[0].mxu0
        %v1784 = vadd.f32 %v1633, %v1783
        %v1785 = vpop.f32.mrb[0].mxu0
        %1786 = vmatprep.mubr.f32.mxu0 0.0
        %1787 = vmatmul.mubr.f32.gmra.mrb[0].mxu0 %v1659
        %v1788 = vpop.f32.mrb[0].mxu0
        %v1789 = vadd.f32 %v1633, %v1788
        %v1790 = vpop.f32.mrb[0].mxu0
        %1791 = vmatprep.mubr.f32.mxu0 0.0
        %1792 = vmatmul.mubr.f32.gmra.mrb[0].mxu0 %v1662
        %v1793 = vpop.f32.mrb[0].mxu0
        %v1794 = vadd.f32 %v1633, %v1793
        %v1795 = vpop.f32.mrb[0].mxu0
        %1796 = vmatprep.mubr.f32.mxu0 0.0
        %1797 = vmatmul.mubr.f32.gmra.mrb[0].mxu0 %v1665
        %v1798 = vpop.f32.mrb[0].mxu0
        %v1799 = vadd.f32 %v1633, %v1798
        %v1800 = vpop.f32.mrb[0].mxu0
        %1801 = vmatprep.mubr.f32.mxu0 0.0
        %1802 = vmatmul.mubr.f32.gmra.mrb[0].mxu0 %v1668
        %v1803 = vpop.f32.mrb[0].mxu0
        %v1804 = vadd.f32 %v1633, %v1803
        %v1805 = vpop.f32.mrb[0].mxu0
        %1806 = vmatprep.mubr.f32.mxu0 0.0
        %1807 = vmatmul.mubr.f32.gmra.mrb[0].mxu0 %v1671
        %v1808 = vpop.f32.mrb[0].mxu0
        %v1809 = vadd.f32 %v1633, %v1808
        %v1810 = vpop.f32.mrb[0].mxu0
        %1811 = vmatprep.mubr.f32.mxu0 0.0
        %1812 = vmatmul.mubr.f32.gmra.mrb[0].mxu0 %v1674
        %v1813 = vpop.f32.mrb[0].mxu0
        %v1814 = vadd.f32 %v1633, %v1813
        %v1815 = vpop.f32.mrb[0].mxu0
        %1816 = vmatprep.mubr.f32.mxu0 0.0
        %1817 = vmatmul.mubr.f32.gmra.mrb[0].mxu0 %v1677
        %v1818 = vpop.f32.mrb[0].mxu0
        %v1819 = vadd.f32 %v1633, %v1818
        %v1820 = vpop.f32.mrb[0].mxu0
        %1821 = vmatprep.mubr.f32.mxu0 0.0
        %1822 = vmatmul.mubr.f32.gmra.mrb[0].mxu0 %v1680
        %v1823 = vpop.f32.mrb[0].mxu0
        %v1824 = vadd.f32 %v1633, %v1823
        %v1825 = vpop.f32.mrb[0].mxu0
        %1826 = vdwg.mxu0
        %v1827 = vlaneseq
        %v1828 = vshrl.u32 %v1827, 7
        %v1829 = vsub.s32 0, %v1828
        %v1830 = vrot.slane %v601, %v1829
        %v1831 = vmul.f32 %v1749, %v1830
        %v1832 = vmul.f32 %v1754, %v1830
        %v1833 = vmul.f32 %v1759, %v1830
        %v1834 = vmul.f32 %v1764, %v1830
        %v1835 = vmul.f32 %v1769, %v1830
        %v1836 = vmul.f32 %v1774, %v1830
        %v1837 = vmul.f32 %v1779, %v1830
        %v1838 = vmul.f32 %v1784, %v1830
        %v1839 = vmul.f32 %v1789, %v1830
        %v1840 = vmul.f32 %v1794, %v1830
        %v1841 = vmul.f32 %v1799, %v1830
        %v1842 = vmul.f32 %v1804, %v1830
        %v1843 = vmul.f32 %v1809, %v1830
        %v1844 = vmul.f32 %v1814, %v1830
        %v1845 = vmul.f32 %v1819, %v1830
        %v1846 = vmul.f32 %v1824, %v1830
        %v1847 = vlaneseq
        %v1848 = vshrl.u32 %v1847, 7
        %v1849 = vsub.s32 0, %v1848
        %v1850 = vrot.slane %v602, %v1849
        %v1851 = vadd.f32 %v1831, %v1850
        %v1852 = vadd.f32 %v1832, %v1850
        %v1853 = vadd.f32 %v1833, %v1850
        %v1854 = vadd.f32 %v1834, %v1850
        %v1855 = vadd.f32 %v1835, %v1850
        %v1856 = vadd.f32 %v1836, %v1850
        %v1857 = vadd.f32 %v1837, %v1850
        %v1858 = vadd.f32 %v1838, %v1850
        %v1859 = vadd.f32 %v1839, %v1850
        %v1860 = vadd.f32 %v1840, %v1850
        %v1861 = vadd.f32 %v1841, %v1850
        %v1862 = vadd.f32 %v1842, %v1850
        %v1863 = vadd.f32 %v1843, %v1850
        %v1864 = vadd.f32 %v1844, %v1850
        %v1865 = vadd.f32 %v1845, %v1850
        %v1866 = vadd.f32 %v1846, %v1850
        %vm1867 = vcmp.ge.f32.partialorder %v1851, 0.0
        %vm1868 = vcmp.ge.f32.partialorder %v1852, 0.0
        %vm1869 = vcmp.ge.f32.partialorder %v1853, 0.0
        %vm1870 = vcmp.ge.f32.partialorder %v1854, 0.0
        %vm1871 = vcmp.ge.f32.partialorder %v1855, 0.0
        %vm1872 = vcmp.ge.f32.partialorder %v1856, 0.0
        %vm1873 = vcmp.ge.f32.partialorder %v1857, 0.0
        %vm1874 = vcmp.ge.f32.partialorder %v1858, 0.0
        %vm1875 = vcmp.ge.f32.partialorder %v1859, 0.0
        %vm1876 = vcmp.ge.f32.partialorder %v1860, 0.0
        %vm1877 = vcmp.ge.f32.partialorder %v1861, 0.0
        %vm1878 = vcmp.ge.f32.partialorder %v1862, 0.0
        %vm1879 = vcmp.ge.f32.partialorder %v1863, 0.0
        %vm1880 = vcmp.ge.f32.partialorder %v1864, 0.0
        %vm1881 = vcmp.ge.f32.partialorder %v1865, 0.0
        %vm1882 = vcmp.ge.f32.partialorder %v1866, 0.0
        %v1883 = vmul.f32 %v1851, 0.01
        %v1884 = vmul.f32 %v1852, 0.01
        %v1885 = vmul.f32 %v1853, 0.01
        %v1886 = vmul.f32 %v1854, 0.01
        %v1887 = vmul.f32 %v1855, 0.01
        %v1888 = vmul.f32 %v1856, 0.01
        %v1889 = vmul.f32 %v1857, 0.01
        %v1890 = vmul.f32 %v1858, 0.01
        %v1891 = vmul.f32 %v1859, 0.01
        %v1892 = vmul.f32 %v1860, 0.01
        %v1893 = vmul.f32 %v1861, 0.01
        %v1894 = vmul.f32 %v1862, 0.01
        %v1895 = vmul.f32 %v1863, 0.01
        %v1896 = vmul.f32 %v1864, 0.01
        %v1897 = vmul.f32 %v1865, 0.01
        %v1898 = vmul.f32 %v1866, 0.01
        %v1899 = vsel %vm1867, %v1851, %v1883
        %v1900 = vsel %vm1868, %v1852, %v1884
        %v1901 = vsel %vm1869, %v1853, %v1885
        %v1902 = vsel %vm1870, %v1854, %v1886
        %v1903 = vsel %vm1871, %v1855, %v1887
        %v1904 = vsel %vm1872, %v1856, %v1888
        %v1905 = vsel %vm1873, %v1857, %v1889
        %v1906 = vsel %vm1874, %v1858, %v1890
        %v1907 = vsel %vm1875, %v1859, %v1891
        %v1908 = vsel %vm1876, %v1860, %v1892
        %v1909 = vsel %vm1877, %v1861, %v1893
        %v1910 = vsel %vm1878, %v1862, %v1894
        %v1911 = vsel %vm1879, %v1863, %v1895
        %v1912 = vsel %vm1880, %v1864, %v1896
        %v1913 = vsel %vm1881, %v1865, %v1897
        %v1914 = vsel %vm1882, %v1866, %v1898
        %v1915 = vsel %vm616, %v1899, -inf
        %v1916 = vsel %vm616, %v1903, -inf
        %v1917 = vmax.f32 %v1915, %v1916
        %v1918 = vsel %vm616, %v1907, -inf
        %v1919 = vmax.f32 %v1917, %v1918
        %v1920 = vsel %vm616, %v1911, -inf
        %v1921 = vmax.f32 %v1919, %v1920
        %v1922 = vsel %vm616, %v1900, -inf
        %v1923 = vsel %vm616, %v1904, -inf
        %v1924 = vmax.f32 %v1922, %v1923
        %v1925 = vsel %vm616, %v1908, -inf
        %v1926 = vmax.f32 %v1924, %v1925
        %v1927 = vsel %vm616, %v1912, -inf
        %v1928 = vmax.f32 %v1926, %v1927
        %v1929 = vsel %vm616, %v1901, -inf
        %v1930 = vsel %vm616, %v1905, -inf
        %v1931 = vmax.f32 %v1929, %v1930
        %v1932 = vsel %vm616, %v1909, -inf
        %v1933 = vmax.f32 %v1931, %v1932
        %v1934 = vsel %vm616, %v1913, -inf
        %v1935 = vmax.f32 %v1933, %v1934
        %v1936 = vsel %vm616, %v1902, -inf
        %v1937 = vsel %vm616, %v1906, -inf
        %v1938 = vmax.f32 %v1936, %v1937
        %v1939 = vsel %vm616, %v1910, -inf
        %v1940 = vmax.f32 %v1938, %v1939
        %v1941 = vsel %vm616, %v1914, -inf
        %v1942 = vmax.f32 %v1940, %v1941
        %v1943 = vsub.f32 %v1899, %v1921
        %v1944 = vsub.f32 %v1900, %v1928
        %v1945 = vsub.f32 %v1901, %v1935
        %v1946 = vsub.f32 %v1902, %v1942
        %v1947 = vsub.f32 %v1903, %v1921
        %v1948 = vsub.f32 %v1904, %v1928
        %v1949 = vsub.f32 %v1905, %v1935
        %v1950 = vsub.f32 %v1906, %v1942
        %v1951 = vsub.f32 %v1907, %v1921
        %v1952 = vsub.f32 %v1908, %v1928
        %v1953 = vsub.f32 %v1909, %v1935
        %v1954 = vsub.f32 %v1910, %v1942
        %v1955 = vsub.f32 %v1911, %v1921
        %v1956 = vsub.f32 %v1912, %v1928
        %v1957 = vsub.f32 %v1913, %v1935
        %v1958 = vsub.f32 %v1914, %v1942
        %v1959 = vmul.f32 %v1943, 1.442695
        %v1960 = vpow.pop %v1959
        %v1961 = vmul.f32 %v1944, 1.442695
        %v1962 = vpow.pop %v1961
        %v1963 = vmul.f32 %v1945, 1.442695
        %v1964 = vpow.pop %v1963
        %v1965 = vmul.f32 %v1946, 1.442695
        %v1966 = vpow.pop %v1965
        %v1967 = vmul.f32 %v1947, 1.442695
        %v1968 = vpow.pop %v1967
        %v1969 = vmul.f32 %v1948, 1.442695
        %v1970 = vpow.pop %v1969
        %v1971 = vmul.f32 %v1949, 1.442695
        %v1972 = vpow.pop %v1971
        %v1973 = vmul.f32 %v1950, 1.442695
        %v1974 = vpow.pop %v1973
        %v1975 = vmul.f32 %v1951, 1.442695
        %v1976 = vpow.pop %v1975
        %v1977 = vmul.f32 %v1952, 1.442695
        %v1978 = vpow.pop %v1977
        %v1979 = vmul.f32 %v1953, 1.442695
        %v1980 = vpow.pop %v1979
        %v1981 = vmul.f32 %v1954, 1.442695
        %v1982 = vpow.pop %v1981
        %v1983 = vmul.f32 %v1955, 1.442695
        %v1984 = vpow.pop %v1983
        %v1985 = vmul.f32 %v1956, 1.442695
        %v1986 = vpow.pop %v1985
        %v1987 = vmul.f32 %v1957, 1.442695
        %v1988 = vpow.pop %v1987
        %v1989 = vmul.f32 %v1958, 1.442695
        %v1990 = vpow.pop %v1989
        %v1991 = vsel %vm616, %v1960, 0.0
        %v1992 = vsel %vm616, %v1968, 0.0
        %v1993 = vadd.f32 %v1991, %v1992
        %v1994 = vsel %vm616, %v1976, 0.0
        %v1995 = vadd.f32 %v1993, %v1994
        %v1996 = vsel %vm616, %v1984, 0.0
        %v1997 = vadd.f32 %v1995, %v1996
        %v1998 = vsel %vm616, %v1962, 0.0
        %v1999 = vsel %vm616, %v1970, 0.0
        %v2000 = vadd.f32 %v1998, %v1999
        %v2001 = vsel %vm616, %v1978, 0.0
        %v2002 = vadd.f32 %v2000, %v2001
        %v2003 = vsel %vm616, %v1986, 0.0
        %v2004 = vadd.f32 %v2002, %v2003
        %v2005 = vsel %vm616, %v1964, 0.0
        %v2006 = vsel %vm616, %v1972, 0.0
        %v2007 = vadd.f32 %v2005, %v2006
        %v2008 = vsel %vm616, %v1980, 0.0
        %v2009 = vadd.f32 %v2007, %v2008
        %v2010 = vsel %vm616, %v1988, 0.0
        %v2011 = vadd.f32 %v2009, %v2010
        %v2012 = vsel %vm616, %v1966, 0.0
        %v2013 = vsel %vm616, %v1974, 0.0
        %v2014 = vadd.f32 %v2012, %v2013
        %v2015 = vsel %vm616, %v1982, 0.0
        %v2016 = vadd.f32 %v2014, %v2015
        %v2017 = vsel %vm616, %v1990, 0.0
        %v2018 = vadd.f32 %v2016, %v2017
        %2035 = vrot.lane.b32.xlu0 %v1490, 96
        %v2036 = vpop.permute.xlu0 %2035
        %2037 = vrot.lane.b32.xlu0 %v1491, 96
        %v2038 = vpop.permute.xlu0 %2037
        %2039 = vrot.lane.b32.xlu0 %v1492, 96
        %v2040 = vpop.permute.xlu0 %2039
        %2041 = vrot.lane.b32.xlu0 %v1493, 96
        %v2042 = vpop.permute.xlu0 %2041
        %2043 = vrot.lane.b32.xlu0 %v1494, 96
        %v2044 = vpop.permute.xlu0 %2043
        %2045 = vrot.lane.b32.xlu0 %v1495, 96
        %v2046 = vpop.permute.xlu0 %2045
        %2047 = vrot.lane.b32.xlu0 %v1496, 96
        %v2048 = vpop.permute.xlu0 %2047
        %2049 = vrot.lane.b32.xlu0 %v1497, 96
        %v2050 = vpop.permute.xlu0 %2049
        %2051 = vrot.lane.b32.xlu0 %v1498, 96
        %v2052 = vpop.permute.xlu0 %2051
        %2053 = vrot.lane.b32.xlu0 %v1499, 96
        %v2054 = vpop.permute.xlu0 %2053
        %2055 = vrot.lane.b32.xlu0 %v1500, 96
        %v2056 = vpop.permute.xlu0 %2055
        %2057 = vrot.lane.b32.xlu0 %v1501, 96
        %v2058 = vpop.permute.xlu0 %2057
        %2059 = vrot.lane.b32.xlu0 %v1502, 96
        %v2060 = vpop.permute.xlu0 %2059
        %2061 = vrot.lane.b32.xlu0 %v1503, 96
        %v2062 = vpop.permute.xlu0 %2061
        %2063 = vrot.lane.b32.xlu0 %v1504, 96
        %v2064 = vpop.permute.xlu0 %2063
        %2065 = vrot.lane.b32.xlu0 %v1505, 96
        %v2066 = vpop.permute.xlu0 %2065
        %v2083 = vmul.f32 %v1960, %v2036
        %v2084 = vmul.f32 %v1962, %v2038
        %v2085 = vmul.f32 %v1964, %v2040
        %v2086 = vmul.f32 %v1966, %v2042
        %v2087 = vmul.f32 %v1968, %v2044
        %v2088 = vmul.f32 %v1970, %v2046
        %v2089 = vmul.f32 %v1972, %v2048
        %v2090 = vmul.f32 %v1974, %v2050
        %v2091 = vmul.f32 %v1976, %v2052
        %v2092 = vmul.f32 %v1978, %v2054
        %v2093 = vmul.f32 %v1980, %v2056
        %v2094 = vmul.f32 %v1982, %v2058
        %v2095 = vmul.f32 %v1984, %v2060
        %v2096 = vmul.f32 %v1986, %v2062
        %v2097 = vmul.f32 %v1988, %v2064
        %v2098 = vmul.f32 %v1990, %v2066
        %v2099 = vsel %vm616, %v2083, 0.0
        %v2100 = vsel %vm616, %v2087, 0.0
        %v2101 = vadd.f32 %v2099, %v2100
        %v2102 = vsel %vm616, %v2091, 0.0
        %v2103 = vadd.f32 %v2101, %v2102
        %v2104 = vsel %vm616, %v2095, 0.0
        %v2105 = vadd.f32 %v2103, %v2104
        %v2106 = vsel %vm616, %v2084, 0.0
        %v2107 = vsel %vm616, %v2088, 0.0
        %v2108 = vadd.f32 %v2106, %v2107
        %v2109 = vsel %vm616, %v2092, 0.0
        %v2110 = vadd.f32 %v2108, %v2109
        %v2111 = vsel %vm616, %v2096, 0.0
        %v2112 = vadd.f32 %v2110, %v2111
        %v2113 = vsel %vm616, %v2085, 0.0
        %v2114 = vsel %vm616, %v2089, 0.0
        %v2115 = vadd.f32 %v2113, %v2114
        %v2116 = vsel %vm616, %v2093, 0.0
        %v2117 = vadd.f32 %v2115, %v2116
        %v2118 = vsel %vm616, %v2097, 0.0
        %v2119 = vadd.f32 %v2117, %v2118
        %v2120 = vsel %vm616, %v2086, 0.0
        %v2121 = vsel %vm616, %v2090, 0.0
        %v2122 = vadd.f32 %v2120, %v2121
        %v2123 = vsel %vm616, %v2094, 0.0
        %v2124 = vadd.f32 %v2122, %v2123
        %v2125 = vsel %vm616, %v2098, 0.0
        %v2126 = vadd.f32 %v2124, %v2125
        %v2127 = vrcp.pop %v1997
        %v2128 = vrcp.pop %v2004
        %v2129 = vrcp.pop %v2011
        %v2130 = vrcp.pop %v2018
        %v2131 = vmul.f32 %v2105, %v2127
        %v2132 = vmul.f32 %v2112, %v2128
        %v2133 = vmul.f32 %v2119, %v2129
        %v2134 = vmul.f32 %v2126, %v2130
        %2135 = vst.msk [vmem:[%s593] sm:$0xff] %vm616, %v2131
        %2136 = vst.msk [vmem:[%s593 + $0x8] sm:$0xff] %vm616, %v2132
        %2137 = vst.msk [vmem:[%s593 + $0x10] sm:$0xff] %vm616, %v2133
        %2138 = vst.msk [vmem:[%s593 + $0x18] sm:$0xff] %vm616, %v2134
        %s2139 = smul.u32 4, %s21
        %p2140 = scmp.lt.s32.totalorder %s2139, 7
        %s2141 = scalar_select %p2140, %s2139, 7
        %s2142 = smul.addr %s2141, 8
        %s2143 = scalar_lea.vmem %s10, %s2142
        // Predicated region
        $region137: #{tpu_custom_call.1} parent=127 // pred_check
          %p2144 = pneg %p264
        $region138: #{tpu_custom_call.1} parent=127 // pred_check_branch
          %2146 = sbr.rel (%p2144) target = $region140
        $region139: #{tpu_custom_call.1} parent=127 // pred_region
          %s2147 = smul.u32 4, %s21
        $region140: #{tpu_custom_call.1} parent=127 // pred_fallthru
          _
      $region128: #{tpu_custom_call.1} parent=5 // pred_fallthru
        _
      %p2148 = scmp.le.s32.totalorder 2, %s16
      // Predicated region
      $region141: #{tpu_custom_call.1} parent=5 // pred_check
        %p2149 = pneg %p2148
      $region142: #{tpu_custom_call.1} parent=5 // pred_check_branch
        %2151 = sbr.rel (%p2149) target = $region144
      $region143: #{tpu_custom_call.1} parent=5 // pred_region
        %s2152 = ssub.s32 %s16, 2
        // Predicated region
        $region145: #{tpu_custom_call.1} parent=143 // pred_check
          %p2153 = pneg %p270
        $region146: #{tpu_custom_call.1} parent=143 // pred_check_branch
          %2155 = sbr.rel (%p2153) target = $region148
        $region147: #{tpu_custom_call.1} parent=143 // pred_region
          %s2156 = smul.u32 4, %s22
          %p2157 = scmp.lt.s32.totalorder %s2156, 7
          %s2158 = scalar_select %p2157, %s2156, 7
          %s2159 = smul.addr %s2158, 8
          %s2160 = scalar_lea.vmem %s10, %s2159
        $region148: #{tpu_custom_call.1} parent=143 // pred_fallthru
          _
      $region144: #{tpu_custom_call.1} parent=5 // pred_fallthru
        _
    $region6: #{tpu_custom_call.1} parent=1 // loop_footer
      %s20 = sadd.s32 1, %s16
    $region7: #{tpu_custom_call.1} parent=1 // loop_footer_branch
      %15 = sbr.rel target = $region3
    $region8: #{tpu_custom_call.1} parent=1 // loop_exit
      _

</llo_original>
